<compile_context>
chip_gen: v7x
topology: tpu7x:2x2x1
jax: 0.10.0
libtpu: 0.0.40
codegen_flags: <defaults>
</compile_context>

<pallas_src>
import functools
import math

import jax
import jax.numpy as jnp
from jax.experimental import pallas as pl
from jax.experimental.pallas import tpu as pltpu


# ----------------------------- small helpers (f32 VPU math) -----------------------------

def _erf_f32(x):
    # Abramowitz & Stegun 7.1.26 rational approximation (|err| < 1.5e-7 ~ f32 exact).
    p = 0.3275911
    a1, a2, a3, a4, a5 = 0.254829592, -0.284496736, 1.421413741, -1.453152027, 1.061405429
    sign = jnp.where(x >= 0.0, 1.0, -1.0)
    ax = jnp.abs(x)
    t = 1.0 / (1.0 + p * ax)
    poly = ((((a5 * t + a4) * t + a3) * t + a2) * t + a1) * t
    return sign * (1.0 - poly * jnp.exp(-ax * ax))


def _gelu_f32(x):
    # BERT's erf-based GELU; kept in f32 (exp lowers to the EUP slot).
    return 0.5 * x * (1.0 + _erf_f32(x * (1.0 / math.sqrt(2.0))))


def _ln_f32(y, g, b, eps):
    mean = jnp.mean(y, axis=-1, keepdims=True)
    var = jnp.mean(jnp.square(y - mean), axis=-1, keepdims=True)
    return (y - mean) * jax.lax.rsqrt(var + eps) * g + b


def _row_tile(m, target, multiple=16):
    """Pick a row-tile: <= target, divides m, multiple of 16 (bf16 sublane packing)."""
    tm = min(target, m)
    if tm == m:
        return tm
    tm -= tm % multiple
    while tm >= multiple and m % tm != 0:
        tm -= multiple
    return tm if tm >= multiple else m


# ----------------------------- LayerNorm (row-tiled) -----------------------------

def _layernorm_kernel(x_ref, g_ref, b_ref, o_ref, *, eps):
    y = _ln_f32(x_ref[...].astype(jnp.float32), g_ref[...], b_ref[...], eps)
    o_ref[...] = y.astype(o_ref.dtype)


def layernorm(x, gamma, beta, *, eps=1e-12, row_block=256):
    M, H = x.shape
    tm = _row_tile(M, row_block)
    return pl.pallas_call(
        functools.partial(_layernorm_kernel, eps=eps),
        out_shape=jax.ShapeDtypeStruct((M, H), x.dtype),
        grid=(M // tm,),
        in_specs=[
            pl.BlockSpec((tm, H), lambda i: (i, 0)),
            pl.BlockSpec((1, H), lambda i: (0, 0)),
            pl.BlockSpec((1, H), lambda i: (0, 0)),
        ],
        out_specs=pl.BlockSpec((tm, H), lambda i: (i, 0)),
        compiler_params=pltpu.CompilerParams(dimension_semantics=("parallel",)),
    )(x, gamma.reshape(1, H), beta.reshape(1, H))


# ----------------------------- fused attention block -----------------------------
# one kernel = QKV projection + per-head softmax attention + output projection
#              + residual + LayerNorm, per batch element.

def _attn_block_kernel(x_ref, wqkv_ref, bqkv_ref, wo_ref, bo_ref, g_ref, b_ref,
                       m_ref, o_ref, *, num_heads, scale, eps):
    S, H = x_ref.shape
    dh = H // num_heads

    x_bf = x_ref[...]                                        # (S, H) bf16 -> MXU operand
    x_f32 = x_bf.astype(jnp.float32)                         # residual path in f32

    # Fused QKV projection: (S, H) @ (H, 3H), bf16 operands, f32 accumulation.
    qkv = jnp.dot(x_bf, wqkv_ref[...], preferred_element_type=jnp.float32) + bqkv_ref[...]
    wo = wo_ref[...]                                         # (H, H) bf16
    mask = m_ref[...]                                        # (1, S) additive f32

    attn = jnp.zeros((S, H), jnp.float32)
    for h in range(num_heads):                               # heads unrolled inside the kernel
        qh = qkv[:, h * dh:(h + 1) * dh].astype(jnp.bfloat16)              # (S, dh)
        kh = qkv[:, H + h * dh:H + (h + 1) * dh].astype(jnp.bfloat16)      # (S, dh)
        vh = qkv[:, 2 * H + h * dh:2 * H + (h + 1) * dh].astype(jnp.bfloat16)

        # scores = q @ k^T  (contract head_dim on both sides)
        s = jax.lax.dot_general(qh, kh, (((1,), (1,)), ((), ())),
                                preferred_element_type=jnp.float32)
        s = s * scale + mask                                 # additive pad mask over keys
        s_max = jnp.max(s, axis=-1, keepdims=True)
        p = jnp.exp(s - s_max)
        p = p * pl.reciprocal(jnp.sum(p, axis=-1, keepdims=True), approx=True)

        ctx = jnp.dot(p.astype(jnp.bfloat16), vh, preferred_element_type=jnp.float32)
        # Output projection folded per head: concat_h(ctx_h) @ Wo == sum_h ctx_h @ Wo[h*dh:(h+1)*dh]
        attn = attn + jnp.dot(ctx.astype(jnp.bfloat16), wo[h * dh:(h + 1) * dh, :],
                              preferred_element_type=jnp.float32)

    attn = attn + bo_ref[...]
    y = _ln_f32(attn + x_f32, g_ref[...], b_ref[...], eps)   # residual + LN fused
    o_ref[...] = y.astype(o_ref.dtype)


def attention_block(x, wqkv, bqkv, wo, bo, ln_g, ln_b, ext_mask, *, num_heads, eps=1e-12):
    B, S, H = x.shape
    scale = 1.0 / math.sqrt(H // num_heads)
    return pl.pallas_call(
        functools.partial(_attn_block_kernel, num_heads=num_heads, scale=scale, eps=eps),
        out_shape=jax.ShapeDtypeStruct((B, S, H), x.dtype),
        grid=(B,),
        in_specs=[
            pl.BlockSpec((None, S, H), lambda b: (b, 0, 0)),
            pl.BlockSpec((H, 3 * H), lambda b: (0, 0)),
            pl.BlockSpec((1, 3 * H), lambda b: (0, 0)),
            pl.BlockSpec((H, H), lambda b: (0, 0)),
            pl.BlockSpec((1, H), lambda b: (0, 0)),
            pl.BlockSpec((1, H), lambda b: (0, 0)),
            pl.BlockSpec((1, H), lambda b: (0, 0)),
            pl.BlockSpec((None, 1, S), lambda b: (b, 0, 0)),
        ],
        out_specs=pl.BlockSpec((None, S, H), lambda b: (b, 0, 0)),
        compiler_params=pltpu.CompilerParams(dimension_semantics=("parallel",)),
    )(x, wqkv, bqkv.reshape(1, 3 * H), wo, bo.reshape(1, H),
      ln_g.reshape(1, H), ln_b.reshape(1, H), ext_mask)


# ----------------------------- fused FFN block (row-tiled) -----------------------------
# one kernel = intermediate matmul + GELU + output matmul + residual + LayerNorm.

def _ffn_block_kernel(x_ref, wi_ref, bi_ref, wf_ref, bf_ref, g_ref, b_ref, o_ref, *, eps):
    x_bf = x_ref[...]                                        # (tm, H) bf16
    inter = jnp.dot(x_bf, wi_ref[...], preferred_element_type=jnp.float32) + bi_ref[...]
    inter = _gelu_f32(inter)
    ffn = jnp.dot(inter.astype(jnp.bfloat16), wf_ref[...],
                  preferred_element_type=jnp.float32) + bf_ref[...]
    y = _ln_f32(ffn + x_bf.astype(jnp.float32), g_ref[...], b_ref[...], eps)
    o_ref[...] = y.astype(o_ref.dtype)


def ffn_block(x, wi, bi, wf, bf, ln_g, ln_b, *, eps=1e-12, row_block=256):
    M, H = x.shape
    I = wi.shape[1]
    tm = _row_tile(M, row_block)
    return pl.pallas_call(
        functools.partial(_ffn_block_kernel, eps=eps),
        out_shape=jax.ShapeDtypeStruct((M, H), x.dtype),
        grid=(M // tm,),
        in_specs=[
            pl.BlockSpec((tm, H), lambda i: (i, 0)),
            pl.BlockSpec((H, I), lambda i: (0, 0)),
            pl.BlockSpec((1, I), lambda i: (0, 0)),
            pl.BlockSpec((I, H), lambda i: (0, 0)),
            pl.BlockSpec((1, H), lambda i: (0, 0)),
            pl.BlockSpec((1, H), lambda i: (0, 0)),
            pl.BlockSpec((1, H), lambda i: (0, 0)),
        ],
        out_specs=pl.BlockSpec((tm, H), lambda i: (i, 0)),
        compiler_params=pltpu.CompilerParams(dimension_semantics=("parallel",)),
    )(x, wi, bi.reshape(1, I), wf, bf.reshape(1, H),
      ln_g.reshape(1, H), ln_b.reshape(1, H))


# ----------------------------- fused pooler + classifier head -----------------------------

def _head_kernel(x_ref, wp_ref, bp_ref, wc_ref, bc_ref, o_ref):
    pooled = jnp.tanh(jnp.dot(x_ref[...], wp_ref[...],
                              preferred_element_type=jnp.float32) + bp_ref[...])
    # self.drop = nn.Dropout(p=0.3): identity in eval/inference mode.
    # TODO(synk): training-mode dropout (random masking, p=0.3 / p=0.1 emb) not implemented.
    logits = jnp.dot(pooled.astype(jnp.bfloat16), wc_ref[...],
                     preferred_element_type=jnp.float32) + bc_ref[...]
    o_ref[...] = logits


def pooler_classifier(cls_tokens, wp, bp, wc, bc):
    B, H = cls_tokens.shape
    n_classes = wc.shape[1]
    n_pad = max(128, -(-n_classes // 128) * 128)             # lane-dense output slab
    wc_p = jnp.zeros((H, n_pad), wc.dtype).at[:, :n_classes].set(wc)
    bc_p = jnp.zeros((1, n_pad), jnp.float32).at[0, :n_classes].set(bc)
    logits = pl.pallas_call(
        _head_kernel,
        out_shape=jax.ShapeDtypeStruct((B, n_pad), jnp.float32),
        grid=(1,),
        in_specs=[
            pl.BlockSpec((B, H), lambda i: (0, 0)),
            pl.BlockSpec((H, H), lambda i: (0, 0)),
            pl.BlockSpec((1, H), lambda i: (0, 0)),
            pl.BlockSpec((H, n_pad), lambda i: (0, 0)),
            pl.BlockSpec((1, n_pad), lambda i: (0, 0)),
        ],
        out_specs=pl.BlockSpec((B, n_pad), lambda i: (0, 0)),
    )(cls_tokens, wp, bp.reshape(1, H), wc_p, bc_p)
    return logits[:, :n_classes]


# ----------------------------- model (glue + kernels) -----------------------------

def init_params(key, cfg):
    H, I = cfg["hidden"], cfg["intermediate"]

    def w_init(k, shape):                                    # bf16 weights (MXU operands)
        return (0.02 * jax.random.normal(k, shape, dtype=jnp.float32)).astype(jnp.bfloat16)

    keys = iter(jax.random.split(key, 8 + 8 * cfg["layers"]))
    params = {
        "embeddings": {
            "word": 0.02 * jax.random.normal(next(keys), (cfg["vocab"], H), dtype=jnp.float32),
            "position": 0.02 * jax.random.normal(next(keys), (cfg["max_pos"], H), dtype=jnp.float32),
            "token_type": 0.02 * jax.random.normal(next(keys), (cfg["type_vocab"], H), dtype=jnp.float32),
            "ln_g": jnp.ones((H,), jnp.float32),
            "ln_b": jnp.zeros((H,), jnp.float32),
        },
        "layers": [],
        "pooler_w": w_init(next(keys), (H, H)),
        "pooler_b": jnp.zeros((H,), jnp.float32),
        "out_w": w_init(next(keys), (H, cfg["n_classes"])),
        "out_b": jnp.zeros((cfg["n_classes"],), jnp.float32),
    }
    for _ in range(cfg["layers"]):
        params["layers"].append({
            # fused QKV weight: [H, 3H] = (Wq | Wk | Wv) along the output axis
            "wqkv": w_init(next(keys), (H, 3 * H)), "bqkv": jnp.zeros((3 * H,), jnp.float32),
            "wo": w_init(next(keys), (H, H)), "bo": jnp.zeros((H,), jnp.float32),
            "ln1_g": jnp.ones((H,), jnp.float32), "ln1_b": jnp.zeros((H,), jnp.float32),
            "wi": w_init(next(keys), (H, I)), "bi": jnp.zeros((I,), jnp.float32),
            "wf": w_init(next(keys), (I, H)), "bf": jnp.zeros((H,), jnp.float32),
            "ln2_g": jnp.ones((H,), jnp.float32), "ln2_b": jnp.zeros((H,), jnp.float32),
        })
    return params


def mex_span_classifier_forward(params, input_ids, attention_mask, cfg):
    B, S = input_ids.shape
    H, nH = cfg["hidden"], cfg["heads"]
    row_block = cfg.get("row_block", 256)

    # --- BERT embeddings (table gathers are XLA glue; LayerNorm is a Pallas kernel) ---
    emb = params["embeddings"]
    h = (jnp.take(emb["word"], input_ids, axis=0)
         + emb["position"][:S][None, :, :]
         + jnp.take(emb["token_type"], jnp.zeros_like(input_ids), axis=0))
    h = h.astype(jnp.bfloat16)                               # bf16 activation slabs in HBM
    h = layernorm(h.reshape(B * S, H), emb["ln_g"], emb["ln_b"], row_block=row_block)
    h = h.reshape(B, S, H)
    # (embedding dropout p=0.1 is identity at inference)

    # HF-style extended additive attention mask, [B, 1, S].
    ext_mask = ((1.0 - attention_mask.astype(jnp.float32)) * -10000.0)[:, None, :]

    # --- encoder layers: 2 fused pallas_calls per layer ---
    for lyr in params["layers"]:
        h = attention_block(h, lyr["wqkv"], lyr["bqkv"], lyr["wo"], lyr["bo"],
                            lyr["ln1_g"], lyr["ln1_b"], ext_mask, num_heads=nH)
        h = ffn_block(h.reshape(B * S, H), lyr["wi"], lyr["bi"], lyr["wf"], lyr["bf"],
                      lyr["ln2_g"], lyr["ln2_b"], row_block=row_block).reshape(B, S, H)

    # --- pooled_output = tanh(W_pool @ h[:, 0] + b); dropout (eval) ; classifier ---
    logits = pooler_classifier(h[:, 0, :], params["pooler_w"], params["pooler_b"],
                               params["out_w"], params["out_b"])
    return logits


if __name__ == "__main__":
    cfg = dict(vocab=64, hidden=32, heads=4, intermediate=64, max_pos=16,
               type_vocab=2, layers=2, n_classes=3, row_block=16)

    key = jax.random.PRNGKey(0)
    k_params, k_ids = jax.random.split(key)
    params = init_params(k_params, cfg)

    B, S = 2, 16
    input_ids = jax.random.randint(k_ids, (B, S), 0, cfg["vocab"], dtype=jnp.int32)
    attention_mask = jnp.ones((B, S), dtype=jnp.int32).at[:, 12:].set(0)  # last 4 tokens padded

    fwd = jax.jit(lambda p, ids, mask: mex_span_classifier_forward(p, ids, mask, cfg))
    logits = fwd(params, input_ids, attention_mask)
    jax.block_until_ready(logits)
    assert logits.shape == (B, cfg["n_classes"]) and logits.dtype == jnp.float32
    print("KERNEL_OK")
</pallas_src>

<mosaic_0001>
module attributes {stable_mosaic.version = 11 : i64} {
  func.func @_layernorm_kernel(%arg0: i32, %arg1: memref<16x32xbf16, #tpu.memory_space<vmem>>, %arg2: memref<1x32xf32, #tpu.memory_space<vmem>>, %arg3: memref<1x32xf32, #tpu.memory_space<vmem>>, %arg4: memref<16x32xbf16, #tpu.memory_space<vmem>>) attributes {dimension_semantics = [#tpu.dimension_semantics<parallel>], iteration_bounds = array<i64: 2>, scalar_prefetch = 0 : i64, scratch_operands = 0 : i64, tpu.core_type = #tpu.core_type<tc>, window_params = [{transform_indices = @transform_0, window_bounds = array<i64: 16, 32>}, {pipeline_mode = #tpu.pipeline_mode<synchronous>, transform_indices = @transform_1, window_bounds = array<i64: 1, 32>}, {pipeline_mode = #tpu.pipeline_mode<synchronous>, transform_indices = @transform_2, window_bounds = array<i64: 1, 32>}, {transform_indices = @transform_3, window_bounds = array<i64: 16, 32>}]} {
    %c0 = arith.constant 0 : index
    %c0_0 = arith.constant 0 : index
    %0 = vector.load %arg1[%c0, %c0_0] : memref<16x32xbf16, #tpu.memory_space<vmem>>, vector<16x32xbf16>
    %1 = arith.extf %0 : vector<16x32xbf16> to vector<16x32xf32>
    %c0_1 = arith.constant 0 : index
    %c0_2 = arith.constant 0 : index
    %2 = vector.load %arg2[%c0_1, %c0_2] : memref<1x32xf32, #tpu.memory_space<vmem>>, vector<1x32xf32>
    %c0_3 = arith.constant 0 : index
    %c0_4 = arith.constant 0 : index
    %3 = vector.load %arg3[%c0_3, %c0_4] : memref<1x32xf32, #tpu.memory_space<vmem>>, vector<1x32xf32>
    %cst = arith.constant dense<0.000000e+00> : vector<16xf32>
    %4 = vector.multi_reduction <add>, %1, %cst [1] : vector<16x32xf32> to vector<16xf32>
    %5 = vector.shape_cast %4 : vector<16xf32> to vector<16x1xf32>
    %cst_5 = arith.constant 3.200000e+01 : f32
    %6 = vector.broadcast %cst_5 : f32 to vector<16x1xf32>
    %7 = arith.divf %5, %6 : vector<16x1xf32>
    %8 = vector.broadcast %7 : vector<16x1xf32> to vector<16x32xf32>
    %9 = arith.subf %1, %8 : vector<16x32xf32>
    %10 = arith.mulf %9, %9 : vector<16x32xf32>
    %cst_6 = arith.constant dense<0.000000e+00> : vector<16xf32>
    %11 = vector.multi_reduction <add>, %10, %cst_6 [1] : vector<16x32xf32> to vector<16xf32>
    %12 = vector.shape_cast %11 : vector<16xf32> to vector<16x1xf32>
    %cst_7 = arith.constant 3.200000e+01 : f32
    %13 = vector.broadcast %cst_7 : f32 to vector<16x1xf32>
    %14 = arith.divf %12, %13 : vector<16x1xf32>
    %15 = vector.broadcast %7 : vector<16x1xf32> to vector<16x32xf32>
    %16 = arith.subf %1, %15 : vector<16x32xf32>
    %cst_8 = arith.constant 9.99999996E-13 : f32
    %17 = vector.broadcast %cst_8 : f32 to vector<16x1xf32>
    %18 = arith.addf %14, %17 : vector<16x1xf32>
    %19 = math.rsqrt %18 : vector<16x1xf32>
    %20 = vector.broadcast %19 : vector<16x1xf32> to vector<16x32xf32>
    %21 = arith.mulf %16, %20 : vector<16x32xf32>
    %22 = vector.broadcast %2 : vector<1x32xf32> to vector<16x32xf32>
    %23 = arith.mulf %21, %22 : vector<16x32xf32>
    %24 = vector.broadcast %3 : vector<1x32xf32> to vector<16x32xf32>
    %25 = arith.addf %23, %24 : vector<16x32xf32>
    %26 = arith.truncf %25 : vector<16x32xf32> to vector<16x32xbf16>
    %c0_9 = arith.constant 0 : index
    %c0_10 = arith.constant 0 : index
    %27 = vector.load %arg4[%c0_9, %c0_10] : memref<16x32xbf16, #tpu.memory_space<vmem>>, vector<16x32xbf16>
    tpu.vector_store %arg4[%c0_9, %c0_10], %26 {strides = array<i32>} : memref<16x32xbf16, #tpu.memory_space<vmem>>, vector<16x32xbf16>,
    return
  }
  func.func @transform_0(%arg0: i32) -> (i32, i32) {
    %c0_i32 = arith.constant 0 : i32
    %c0_i32_0 = arith.constant 0 : i32
    return %arg0, %c0_i32 : i32, i32
  }
  func.func @transform_1(%arg0: i32) -> (i32, i32) {
    %c0_i32 = arith.constant 0 : i32
    %c0_i32_0 = arith.constant 0 : i32
    %c0_i32_1 = arith.constant 0 : i32
    return %c0_i32, %c0_i32_0 : i32, i32
  }
  func.func @transform_2(%arg0: i32) -> (i32, i32) {
    %c0_i32 = arith.constant 0 : i32
    %c0_i32_0 = arith.constant 0 : i32
    %c0_i32_1 = arith.constant 0 : i32
    return %c0_i32, %c0_i32_0 : i32, i32
  }
  func.func @transform_3(%arg0: i32) -> (i32, i32) {
    %c0_i32 = arith.constant 0 : i32
    %c0_i32_0 = arith.constant 0 : i32
    return %arg0, %c0_i32 : i32, i32
  }
}

module attributes {stable_mosaic.version = 11 : i64} {
  func.func @_attn_block_kernel(%arg0: i32, %arg1: memref<1x16x32xbf16, #tpu.memory_space<vmem>>, %arg2: memref<32x96xbf16, #tpu.memory_space<vmem>>, %arg3: memref<1x96xf32, #tpu.memory_space<vmem>>, %arg4: memref<32x32xbf16, #tpu.memory_space<vmem>>, %arg5: memref<1x32xf32, #tpu.memory_space<vmem>>, %arg6: memref<1x32xf32, #tpu.memory_space<vmem>>, %arg7: memref<1x32xf32, #tpu.memory_space<vmem>>, %arg8: memref<1x1x16xf32, #tpu.memory_space<vmem>>, %arg9: memref<1x16x32xbf16, #tpu.memory_space<vmem>>) attributes {dimension_semantics = [#tpu.dimension_semantics<parallel>], iteration_bounds = array<i64: 2>, scalar_prefetch = 0 : i64, scratch_operands = 0 : i64, tpu.core_type = #tpu.core_type<tc>, window_params = [{transform_indices = @transform_0, window_bounds = array<i64: 1, 16, 32>}, {pipeline_mode = #tpu.pipeline_mode<synchronous>, transform_indices = @transform_1, window_bounds = array<i64: 32, 96>}, {pipeline_mode = #tpu.pipeline_mode<synchronous>, transform_indices = @transform_2, window_bounds = array<i64: 1, 96>}, {pipeline_mode = #tpu.pipeline_mode<synchronous>, transform_indices = @transform_3, window_bounds = array<i64: 32, 32>}, {pipeline_mode = #tpu.pipeline_mode<synchronous>, transform_indices = @transform_4, window_bounds = array<i64: 1, 32>}, {pipeline_mode = #tpu.pipeline_mode<synchronous>, transform_indices = @transform_5, window_bounds = array<i64: 1, 32>}, {pipeline_mode = #tpu.pipeline_mode<synchronous>, transform_indices = @transform_6, window_bounds = array<i64: 1, 32>}, {transform_indices = @transform_7, window_bounds = array<i64: 1, 1, 16>}, {transform_indices = @transform_8, window_bounds = array<i64: 1, 16, 32>}]} {
    %c0 = arith.constant 0 : index
    %c0_0 = arith.constant 0 : index
    %c0_1 = arith.constant 0 : index
    %0 = vector.load %arg1[%c0, %c0_0, %c0_1] : memref<1x16x32xbf16, #tpu.memory_space<vmem>>, vector<1x16x32xbf16>
    %1 = vector.shape_cast %0 : vector<1x16x32xbf16> to vector<16x32xbf16>
    %2 = arith.extf %1 : vector<16x32xbf16> to vector<16x32xf32>
    %c0_2 = arith.constant 0 : index
    %c0_3 = arith.constant 0 : index
    %3 = vector.load %arg2[%c0_2, %c0_3] : memref<32x96xbf16, #tpu.memory_space<vmem>>, vector<32x96xbf16>
    %cst = arith.constant dense<0.000000e+00> : vector<16x96xf32>
    %4 = tpu.matmul %1, %3, %cst {dimension_numbers = #tpu.dot_dimension_numbers<[1], [0], [0], [1], [0, 0, 1, 1], [], []>} : vector<16x32xbf16>, vector<32x96xbf16>, vector<16x96xf32> -> vector<16x96xf32>
    %c0_4 = arith.constant 0 : index
    %c0_5 = arith.constant 0 : index
    %5 = vector.load %arg3[%c0_4, %c0_5] : memref<1x96xf32, #tpu.memory_space<vmem>>, vector<1x96xf32>
    %6 = vector.broadcast %5 : vector<1x96xf32> to vector<16x96xf32>
    %7 = arith.addf %4, %6 : vector<16x96xf32>
    %c0_6 = arith.constant 0 : index
    %c0_7 = arith.constant 0 : index
    %8 = vector.load %arg4[%c0_6, %c0_7] : memref<32x32xbf16, #tpu.memory_space<vmem>>, vector<32x32xbf16>
    %c0_8 = arith.constant 0 : index
    %c0_9 = arith.constant 0 : index
    %c0_10 = arith.constant 0 : index
    %9 = vector.load %arg8[%c0_8, %c0_9, %c0_10] : memref<1x1x16xf32, #tpu.memory_space<vmem>>, vector<1x1x16xf32>
    %10 = vector.shape_cast %9 : vector<1x1x16xf32> to vector<1x16xf32>
    %cst_11 = arith.constant 0.000000e+00 : f32
    %11 = vector.broadcast %cst_11 : f32 to vector<16x32xf32>
    %12 = vector.extract_strided_slice %7 {offsets = [0, 0], sizes = [16, 8], strides = [1, 1]} : vector<16x96xf32> to vector<16x8xf32>
    %13 = arith.truncf %12 : vector<16x8xf32> to vector<16x8xbf16>
    %14 = vector.extract_strided_slice %7 {offsets = [0, 32], sizes = [16, 8], strides = [1, 1]} : vector<16x96xf32> to vector<16x8xf32>
    %15 = arith.truncf %14 : vector<16x8xf32> to vector<16x8xbf16>
    %16 = vector.extract_strided_slice %7 {offsets = [0, 64], sizes = [16, 8], strides = [1, 1]} : vector<16x96xf32> to vector<16x8xf32>
    %17 = arith.truncf %16 : vector<16x8xf32> to vector<16x8xbf16>
    %cst_12 = arith.constant dense<0.000000e+00> : vector<16x16xf32>
    %18 = tpu.matmul %13, %15, %cst_12 {dimension_numbers = #tpu.dot_dimension_numbers<[1], [1], [0], [0], [0, 0, 1, 0], [], []>} : vector<16x8xbf16>, vector<16x8xbf16>, vector<16x16xf32> -> vector<16x16xf32>
    %cst_13 = arith.constant 0.353553385 : f32
    %19 = vector.broadcast %cst_13 : f32 to vector<16x16xf32>
    %20 = arith.mulf %18, %19 : vector<16x16xf32>
    %21 = vector.broadcast %10 : vector<1x16xf32> to vector<16x16xf32>
    %22 = arith.addf %20, %21 : vector<16x16xf32>
    %cst_14 = arith.constant dense<0xFF800000> : vector<16xf32>
    %23 = vector.multi_reduction <maximumf>, %22, %cst_14 [1] : vector<16x16xf32> to vector<16xf32>
    %24 = vector.shape_cast %23 : vector<16xf32> to vector<16x1xf32>
    %25 = vector.broadcast %24 : vector<16x1xf32> to vector<16x16xf32>
    %26 = arith.subf %22, %25 : vector<16x16xf32>
    %27 = math.exp %26 : vector<16x16xf32>
    %cst_15 = arith.constant dense<0.000000e+00> : vector<16xf32>
    %28 = vector.multi_reduction <add>, %27, %cst_15 [1] : vector<16x16xf32> to vector<16xf32>
    %29 = vector.shape_cast %28 : vector<16xf32> to vector<16x1xf32>
    %30 = tpu.reciprocal %29 {approx = true} : vector<16x1xf32> -> vector<16x1xf32>
    %31 = vector.broadcast %30 : vector<16x1xf32> to vector<16x16xf32>
    %32 = arith.mulf %27, %31 : vector<16x16xf32>
    %33 = arith.truncf %32 : vector<16x16xf32> to vector<16x16xbf16>
    %cst_16 = arith.constant dense<0.000000e+00> : vector<16x8xf32>
    %34 = tpu.matmul %33, %17, %cst_16 {dimension_numbers = #tpu.dot_dimension_numbers<[1], [0], [0], [1], [0, 0, 1, 1], [], []>} : vector<16x16xbf16>, vector<16x8xbf16>, vector<16x8xf32> -> vector<16x8xf32>
    %35 = arith.truncf %34 : vector<16x8xf32> to vector<16x8xbf16>
    %36 = vector.extract_strided_slice %8 {offsets = [0, 0], sizes = [8, 32], strides = [1, 1]} : vector<32x32xbf16> to vector<8x32xbf16>
    %cst_17 = arith.constant dense<0.000000e+00> : vector<16x32xf32>
    %37 = tpu.matmul %35, %36, %cst_17 {dimension_numbers = #tpu.dot_dimension_numbers<[1], [0], [0], [1], [0, 0, 1, 1], [], []>} : vector<16x8xbf16>, vector<8x32xbf16>, vector<16x32xf32> -> vector<16x32xf32>
    %38 = arith.addf %11, %37 : vector<16x32xf32>
    %39 = vector.extract_strided_slice %7 {offsets = [0, 8], sizes = [16, 8], strides = [1, 1]} : vector<16x96xf32> to vector<16x8xf32>
    %40 = arith.truncf %39 : vector<16x8xf32> to vector<16x8xbf16>
    %41 = vector.extract_strided_slice %7 {offsets = [0, 40], sizes = [16, 8], strides = [1, 1]} : vector<16x96xf32> to vector<16x8xf32>
    %42 = arith.truncf %41 : vector<16x8xf32> to vector<16x8xbf16>
    %43 = vector.extract_strided_slice %7 {offsets = [0, 72], sizes = [16, 8], strides = [1, 1]} : vector<16x96xf32> to vector<16x8xf32>
    %44 = arith.truncf %43 : vector<16x8xf32> to vector<16x8xbf16>
    %cst_18 = arith.constant dense<0.000000e+00> : vector<16x16xf32>
    %45 = tpu.matmul %40, %42, %cst_18 {dimension_numbers = #tpu.dot_dimension_numbers<[1], [1], [0], [0], [0, 0, 1, 0], [], []>} : vector<16x8xbf16>, vector<16x8xbf16>, vector<16x16xf32> -> vector<16x16xf32>
    %cst_19 = arith.constant 0.353553385 : f32
    %46 = vector.broadcast %cst_19 : f32 to vector<16x16xf32>
    %47 = arith.mulf %45, %46 : vector<16x16xf32>
    %48 = vector.broadcast %10 : vector<1x16xf32> to vector<16x16xf32>
    %49 = arith.addf %47, %48 : vector<16x16xf32>
    %cst_20 = arith.constant dense<0xFF800000> : vector<16xf32>
    %50 = vector.multi_reduction <maximumf>, %49, %cst_20 [1] : vector<16x16xf32> to vector<16xf32>
    %51 = vector.shape_cast %50 : vector<16xf32> to vector<16x1xf32>
    %52 = vector.broadcast %51 : vector<16x1xf32> to vector<16x16xf32>
    %53 = arith.subf %49, %52 : vector<16x16xf32>
    %54 = math.exp %53 : vector<16x16xf32>
    %cst_21 = arith.constant dense<0.000000e+00> : vector<16xf32>
    %55 = vector.multi_reduction <add>, %54, %cst_21 [1] : vector<16x16xf32> to vector<16xf32>
    %56 = vector.shape_cast %55 : vector<16xf32> to vector<16x1xf32>
    %57 = tpu.reciprocal %56 {approx = true} : vector<16x1xf32> -> vector<16x1xf32>
    %58 = vector.broadcast %57 : vector<16x1xf32> to vector<16x16xf32>
    %59 = arith.mulf %54, %58 : vector<16x16xf32>
    %60 = arith.truncf %59 : vector<16x16xf32> to vector<16x16xbf16>
    %cst_22 = arith.constant dense<0.000000e+00> : vector<16x8xf32>
    %61 = tpu.matmul %60, %44, %cst_22 {dimension_numbers = #tpu.dot_dimension_numbers<[1], [0], [0], [1], [0, 0, 1, 1], [], []>} : vector<16x16xbf16>, vector<16x8xbf16>, vector<16x8xf32> -> vector<16x8xf32>
    %62 = arith.truncf %61 : vector<16x8xf32> to vector<16x8xbf16>
    %63 = vector.extract_strided_slice %8 {offsets = [8, 0], sizes = [8, 32], strides = [1, 1]} : vector<32x32xbf16> to vector<8x32xbf16>
    %cst_23 = arith.constant dense<0.000000e+00> : vector<16x32xf32>
    %64 = tpu.matmul %62, %63, %cst_23 {dimension_numbers = #tpu.dot_dimension_numbers<[1], [0], [0], [1], [0, 0, 1, 1], [], []>} : vector<16x8xbf16>, vector<8x32xbf16>, vector<16x32xf32> -> vector<16x32xf32>
    %65 = arith.addf %38, %64 : vector<16x32xf32>
    %66 = vector.extract_strided_slice %7 {offsets = [0, 16], sizes = [16, 8], strides = [1, 1]} : vector<16x96xf32> to vector<16x8xf32>
    %67 = arith.truncf %66 : vector<16x8xf32> to vector<16x8xbf16>
    %68 = vector.extract_strided_slice %7 {offsets = [0, 48], sizes = [16, 8], strides = [1, 1]} : vector<16x96xf32> to vector<16x8xf32>
    %69 = arith.truncf %68 : vector<16x8xf32> to vector<16x8xbf16>
    %70 = vector.extract_strided_slice %7 {offsets = [0, 80], sizes = [16, 8], strides = [1, 1]} : vector<16x96xf32> to vector<16x8xf32>
    %71 = arith.truncf %70 : vector<16x8xf32> to vector<16x8xbf16>
    %cst_24 = arith.constant dense<0.000000e+00> : vector<16x16xf32>
    %72 = tpu.matmul %67, %69, %cst_24 {dimension_numbers = #tpu.dot_dimension_numbers<[1], [1], [0], [0], [0, 0, 1, 0], [], []>} : vector<16x8xbf16>, vector<16x8xbf16>, vector<16x16xf32> -> vector<16x16xf32>
    %cst_25 = arith.constant 0.353553385 : f32
    %73 = vector.broadcast %cst_25 : f32 to vector<16x16xf32>
    %74 = arith.mulf %72, %73 : vector<16x16xf32>
    %75 = vector.broadcast %10 : vector<1x16xf32> to vector<16x16xf32>
    %76 = arith.addf %74, %75 : vector<16x16xf32>
    %cst_26 = arith.constant dense<0xFF800000> : vector<16xf32>
    %77 = vector.multi_reduction <maximumf>, %76, %cst_26 [1] : vector<16x16xf32> to vector<16xf32>
    %78 = vector.shape_cast %77 : vector<16xf32> to vector<16x1xf32>
    %79 = vector.broadcast %78 : vector<16x1xf32> to vector<16x16xf32>
    %80 = arith.subf %76, %79 : vector<16x16xf32>
    %81 = math.exp %80 : vector<16x16xf32>
    %cst_27 = arith.constant dense<0.000000e+00> : vector<16xf32>
    %82 = vector.multi_reduction <add>, %81, %cst_27 [1] : vector<16x16xf32> to vector<16xf32>
    %83 = vector.shape_cast %82 : vector<16xf32> to vector<16x1xf32>
    %84 = tpu.reciprocal %83 {approx = true} : vector<16x1xf32> -> vector<16x1xf32>
    %85 = vector.broadcast %84 : vector<16x1xf32> to vector<16x16xf32>
    %86 = arith.mulf %81, %85 : vector<16x16xf32>
    %87 = arith.truncf %86 : vector<16x16xf32> to vector<16x16xbf16>
    %cst_28 = arith.constant dense<0.000000e+00> : vector<16x8xf32>
    %88 = tpu.matmul %87, %71, %cst_28 {dimension_numbers = #tpu.dot_dimension_numbers<[1], [0], [0], [1], [0, 0, 1, 1], [], []>} : vector<16x16xbf16>, vector<16x8xbf16>, vector<16x8xf32> -> vector<16x8xf32>
    %89 = arith.truncf %88 : vector<16x8xf32> to vector<16x8xbf16>
    %90 = vector.extract_strided_slice %8 {offsets = [16, 0], sizes = [8, 32], strides = [1, 1]} : vector<32x32xbf16> to vector<8x32xbf16>
    %cst_29 = arith.constant dense<0.000000e+00> : vector<16x32xf32>
    %91 = tpu.matmul %89, %90, %cst_29 {dimension_numbers = #tpu.dot_dimension_numbers<[1], [0], [0], [1], [0, 0, 1, 1], [], []>} : vector<16x8xbf16>, vector<8x32xbf16>, vector<16x32xf32> -> vector<16x32xf32>
    %92 = arith.addf %65, %91 : vector<16x32xf32>
    %93 = vector.extract_strided_slice %7 {offsets = [0, 24], sizes = [16, 8], strides = [1, 1]} : vector<16x96xf32> to vector<16x8xf32>
    %94 = arith.truncf %93 : vector<16x8xf32> to vector<16x8xbf16>
    %95 = vector.extract_strided_slice %7 {offsets = [0, 56], sizes = [16, 8], strides = [1, 1]} : vector<16x96xf32> to vector<16x8xf32>
    %96 = arith.truncf %95 : vector<16x8xf32> to vector<16x8xbf16>
    %97 = vector.extract_strided_slice %7 {offsets = [0, 88], sizes = [16, 8], strides = [1, 1]} : vector<16x96xf32> to vector<16x8xf32>
    %98 = arith.truncf %97 : vector<16x8xf32> to vector<16x8xbf16>
    %cst_30 = arith.constant dense<0.000000e+00> : vector<16x16xf32>
    %99 = tpu.matmul %94, %96, %cst_30 {dimension_numbers = #tpu.dot_dimension_numbers<[1], [1], [0], [0], [0, 0, 1, 0], [], []>} : vector<16x8xbf16>, vector<16x8xbf16>, vector<16x16xf32> -> vector<16x16xf32>
    %cst_31 = arith.constant 0.353553385 : f32
    %100 = vector.broadcast %cst_31 : f32 to vector<16x16xf32>
    %101 = arith.mulf %99, %100 : vector<16x16xf32>
    %102 = vector.broadcast %10 : vector<1x16xf32> to vector<16x16xf32>
    %103 = arith.addf %101, %102 : vector<16x16xf32>
    %cst_32 = arith.constant dense<0xFF800000> : vector<16xf32>
    %104 = vector.multi_reduction <maximumf>, %103, %cst_32 [1] : vector<16x16xf32> to vector<16xf32>
    %105 = vector.shape_cast %104 : vector<16xf32> to vector<16x1xf32>
    %106 = vector.broadcast %105 : vector<16x1xf32> to vector<16x16xf32>
    %107 = arith.subf %103, %106 : vector<16x16xf32>
    %108 = math.exp %107 : vector<16x16xf32>
    %cst_33 = arith.constant dense<0.000000e+00> : vector<16xf32>
    %109 = vector.multi_reduction <add>, %108, %cst_33 [1] : vector<16x16xf32> to vector<16xf32>
    %110 = vector.shape_cast %109 : vector<16xf32> to vector<16x1xf32>
    %111 = tpu.reciprocal %110 {approx = true} : vector<16x1xf32> -> vector<16x1xf32>
    %112 = vector.broadcast %111 : vector<16x1xf32> to vector<16x16xf32>
    %113 = arith.mulf %108, %112 : vector<16x16xf32>
    %114 = arith.truncf %113 : vector<16x16xf32> to vector<16x16xbf16>
    %cst_34 = arith.constant dense<0.000000e+00> : vector<16x8xf32>
    %115 = tpu.matmul %114, %98, %cst_34 {dimension_numbers = #tpu.dot_dimension_numbers<[1], [0], [0], [1], [0, 0, 1, 1], [], []>} : vector<16x16xbf16>, vector<16x8xbf16>, vector<16x8xf32> -> vector<16x8xf32>
    %116 = arith.truncf %115 : vector<16x8xf32> to vector<16x8xbf16>
    %117 = vector.extract_strided_slice %8 {offsets = [24, 0], sizes = [8, 32], strides = [1, 1]} : vector<32x32xbf16> to vector<8x32xbf16>
    %cst_35 = arith.constant dense<0.000000e+00> : vector<16x32xf32>
    %118 = tpu.matmul %116, %117, %cst_35 {dimension_numbers = #tpu.dot_dimension_numbers<[1], [0], [0], [1], [0, 0, 1, 1], [], []>} : vector<16x8xbf16>, vector<8x32xbf16>, vector<16x32xf32> -> vector<16x32xf32>
    %119 = arith.addf %92, %118 : vector<16x32xf32>
    %c0_36 = arith.constant 0 : index
    %c0_37 = arith.constant 0 : index
    %120 = vector.load %arg5[%c0_36, %c0_37] : memref<1x32xf32, #tpu.memory_space<vmem>>, vector<1x32xf32>
    %121 = vector.broadcast %120 : vector<1x32xf32> to vector<16x32xf32>
    %122 = arith.addf %119, %121 : vector<16x32xf32>
    %123 = arith.addf %122, %2 : vector<16x32xf32>
    %c0_38 = arith.constant 0 : index
    %c0_39 = arith.constant 0 : index
    %124 = vector.load %arg6[%c0_38, %c0_39] : memref<1x32xf32, #tpu.memory_space<vmem>>, vector<1x32xf32>
    %c0_40 = arith.constant 0 : index
    %c0_41 = arith.constant 0 : index
    %125 = vector.load %arg7[%c0_40, %c0_41] : memref<1x32xf32, #tpu.memory_space<vmem>>, vector<1x32xf32>
    %cst_42 = arith.constant dense<0.000000e+00> : vector<16xf32>
    %126 = vector.multi_reduction <add>, %123, %cst_42 [1] : vector<16x32xf32> to vector<16xf32>
    %127 = vector.shape_cast %126 : vector<16xf32> to vector<16x1xf32>
    %cst_43 = arith.constant 3.200000e+01 : f32
    %128 = vector.broadcast %cst_43 : f32 to vector<16x1xf32>
    %129 = arith.divf %127, %128 : vector<16x1xf32>
    %130 = vector.broadcast %129 : vector<16x1xf32> to vector<16x32xf32>
    %131 = arith.subf %123, %130 : vector<16x32xf32>
    %132 = arith.mulf %131, %131 : vector<16x32xf32>
    %cst_44 = arith.constant dense<0.000000e+00> : vector<16xf32>
    %133 = vector.multi_reduction <add>, %132, %cst_44 [1] : vector<16x32xf32> to vector<16xf32>
    %134 = vector.shape_cast %133 : vector<16xf32> to vector<16x1xf32>
    %cst_45 = arith.constant 3.200000e+01 : f32
    %135 = vector.broadcast %cst_45 : f32 to vector<16x1xf32>
    %136 = arith.divf %134, %135 : vector<16x1xf32>
    %137 = vector.broadcast %129 : vector<16x1xf32> to vector<16x32xf32>
    %138 = arith.subf %123, %137 : vector<16x32xf32>
    %cst_46 = arith.constant 9.99999996E-13 : f32
    %139 = vector.broadcast %cst_46 : f32 to vector<16x1xf32>
    %140 = arith.addf %136, %139 : vector<16x1xf32>
    %141 = math.rsqrt %140 : vector<16x1xf32>
    %142 = vector.broadcast %141 : vector<16x1xf32> to vector<16x32xf32>
    %143 = arith.mulf %138, %142 : vector<16x32xf32>
    %144 = vector.broadcast %124 : vector<1x32xf32> to vector<16x32xf32>
    %145 = arith.mulf %143, %144 : vector<16x32xf32>
    %146 = vector.broadcast %125 : vector<1x32xf32> to vector<16x32xf32>
    %147 = arith.addf %145, %146 : vector<16x32xf32>
    %148 = arith.truncf %147 : vector<16x32xf32> to vector<16x32xbf16>
    %c0_47 = arith.constant 0 : index
    %c0_48 = arith.constant 0 : index
    %c0_49 = arith.constant 0 : index
    %149 = vector.load %arg9[%c0_47, %c0_48, %c0_49] : memref<1x16x32xbf16, #tpu.memory_space<vmem>>, vector<1x16x32xbf16>
    %150 = vector.shape_cast %149 : vector<1x16x32xbf16> to vector<16x32xbf16>
    %151 = vector.shape_cast %148 : vector<16x32xbf16> to vector<1x16x32xbf16>
    tpu.vector_store %arg9[%c0_47, %c0_48, %c0_49], %151 {strides = array<i32>} : memref<1x16x32xbf16, #tpu.memory_space<vmem>>, vector<1x16x32xbf16>,
    return
  }
  func.func @transform_0(%arg0: i32) -> (i32, i32, i32) {
    %c0_i32 = arith.constant 0 : i32
    %c0_i32_0 = arith.constant 0 : i32
    %c0_i32_1 = arith.constant 0 : i32
    return %arg0, %c0_i32, %c0_i32_0 : i32, i32, i32
  }
  func.func @transform_1(%arg0: i32) -> (i32, i32) {
    %c0_i32 = arith.constant 0 : i32
    %c0_i32_0 = arith.constant 0 : i32
    %c0_i32_1 = arith.constant 0 : i32
    return %c0_i32, %c0_i32_0 : i32, i32
  }
  func.func @transform_2(%arg0: i32) -> (i32, i32) {
    %c0_i32 = arith.constant 0 : i32
    %c0_i32_0 = arith.constant 0 : i32
    %c0_i32_1 = arith.constant 0 : i32
    return %c0_i32, %c0_i32_0 : i32, i32
  }
  func.func @transform_3(%arg0: i32) -> (i32, i32) {
    %c0_i32 = arith.constant 0 : i32
    %c0_i32_0 = arith.constant 0 : i32
    %c0_i32_1 = arith.constant 0 : i32
    return %c0_i32, %c0_i32_0 : i32, i32
  }
  func.func @transform_4(%arg0: i32) -> (i32, i32) {
    %c0_i32 = arith.constant 0 : i32
    %c0_i32_0 = arith.constant 0 : i32
    %c0_i32_1 = arith.constant 0 : i32
    return %c0_i32, %c0_i32_0 : i32, i32
  }
  func.func @transform_5(%arg0: i32) -> (i32, i32) {
    %c0_i32 = arith.constant 0 : i32
    %c0_i32_0 = arith.constant 0 : i32
    %c0_i32_1 = arith.constant 0 : i32
    return %c0_i32, %c0_i32_0 : i32, i32
  }
  func.func @transform_6(%arg0: i32) -> (i32, i32) {
    %c0_i32 = arith.constant 0 : i32
    %c0_i32_0 = arith.constant 0 : i32
    %c0_i32_1 = arith.constant 0 : i32
    return %c0_i32, %c0_i32_0 : i32, i32
  }
  func.func @transform_7(%arg0: i32) -> (i32, i32, i32) {
    %c0_i32 = arith.constant 0 : i32
    %c0_i32_0 = arith.constant 0 : i32
    %c0_i32_1 = arith.constant 0 : i32
    return %arg0, %c0_i32, %c0_i32_0 : i32, i32, i32
  }
  func.func @transform_8(%arg0: i32) -> (i32, i32, i32) {
    %c0_i32 = arith.constant 0 : i32
    %c0_i32_0 = arith.constant 0 : i32
    %c0_i32_1 = arith.constant 0 : i32
    return %arg0, %c0_i32, %c0_i32_0 : i32, i32, i32
  }
}

module attributes {stable_mosaic.version = 11 : i64} {
  func.func @_ffn_block_kernel(%arg0: i32, %arg1: memref<16x32xbf16, #tpu.memory_space<vmem>>, %arg2: memref<32x64xbf16, #tpu.memory_space<vmem>>, %arg3: memref<1x64xf32, #tpu.memory_space<vmem>>, %arg4: memref<64x32xbf16, #tpu.memory_space<vmem>>, %arg5: memref<1x32xf32, #tpu.memory_space<vmem>>, %arg6: memref<1x32xf32, #tpu.memory_space<vmem>>, %arg7: memref<1x32xf32, #tpu.memory_space<vmem>>, %arg8: memref<16x32xbf16, #tpu.memory_space<vmem>>) attributes {dimension_semantics = [#tpu.dimension_semantics<parallel>], iteration_bounds = array<i64: 2>, scalar_prefetch = 0 : i64, scratch_operands = 0 : i64, tpu.core_type = #tpu.core_type<tc>, window_params = [{transform_indices = @transform_0, window_bounds = array<i64: 16, 32>}, {pipeline_mode = #tpu.pipeline_mode<synchronous>, transform_indices = @transform_1, window_bounds = array<i64: 32, 64>}, {pipeline_mode = #tpu.pipeline_mode<synchronous>, transform_indices = @transform_2, window_bounds = array<i64: 1, 64>}, {pipeline_mode = #tpu.pipeline_mode<synchronous>, transform_indices = @transform_3, window_bounds = array<i64: 64, 32>}, {pipeline_mode = #tpu.pipeline_mode<synchronous>, transform_indices = @transform_4, window_bounds = array<i64: 1, 32>}, {pipeline_mode = #tpu.pipeline_mode<synchronous>, transform_indices = @transform_5, window_bounds = array<i64: 1, 32>}, {pipeline_mode = #tpu.pipeline_mode<synchronous>, transform_indices = @transform_6, window_bounds = array<i64: 1, 32>}, {transform_indices = @transform_7, window_bounds = array<i64: 16, 32>}]} {
    %c0 = arith.constant 0 : index
    %c0_0 = arith.constant 0 : index
    %0 = vector.load %arg1[%c0, %c0_0] : memref<16x32xbf16, #tpu.memory_space<vmem>>, vector<16x32xbf16>
    %c0_1 = arith.constant 0 : index
    %c0_2 = arith.constant 0 : index
    %1 = vector.load %arg2[%c0_1, %c0_2] : memref<32x64xbf16, #tpu.memory_space<vmem>>, vector<32x64xbf16>
    %cst = arith.constant dense<0.000000e+00> : vector<16x64xf32>
    %2 = tpu.matmul %0, %1, %cst {dimension_numbers = #tpu.dot_dimension_numbers<[1], [0], [0], [1], [0, 0, 1, 1], [], []>} : vector<16x32xbf16>, vector<32x64xbf16>, vector<16x64xf32> -> vector<16x64xf32>
    %c0_3 = arith.constant 0 : index
    %c0_4 = arith.constant 0 : index
    %3 = vector.load %arg3[%c0_3, %c0_4] : memref<1x64xf32, #tpu.memory_space<vmem>>, vector<1x64xf32>
    %4 = vector.broadcast %3 : vector<1x64xf32> to vector<16x64xf32>
    %5 = arith.addf %2, %4 : vector<16x64xf32>
    %cst_5 = arith.constant 5.000000e-01 : f32
    %6 = vector.broadcast %cst_5 : f32 to vector<16x64xf32>
    %7 = arith.mulf %6, %5 : vector<16x64xf32>
    %cst_6 = arith.constant 0.707106769 : f32
    %8 = vector.broadcast %cst_6 : f32 to vector<16x64xf32>
    %9 = arith.mulf %5, %8 : vector<16x64xf32>
    %cst_7 = arith.constant 0.000000e+00 : f32
    %10 = vector.broadcast %cst_7 : f32 to vector<16x64xf32>
    %11 = arith.cmpf oge, %9, %10 : vector<16x64xf32>
    %cst_8 = arith.constant 1.000000e+00 : f32
    %cst_9 = arith.constant -1.000000e+00 : f32
    %12 = vector.broadcast %cst_8 : f32 to vector<16x64xf32>
    %13 = vector.broadcast %cst_9 : f32 to vector<16x64xf32>
    %14 = arith.select %11, %12, %13 : vector<16x64xi1>, vector<16x64xf32>
    %15 = math.absf %9 : vector<16x64xf32>
    %cst_10 = arith.constant 0.327591091 : f32
    %16 = vector.broadcast %cst_10 : f32 to vector<16x64xf32>
    %17 = arith.mulf %16, %15 : vector<16x64xf32>
    %cst_11 = arith.constant 1.000000e+00 : f32
    %18 = vector.broadcast %cst_11 : f32 to vector<16x64xf32>
    %19 = arith.addf %18, %17 : vector<16x64xf32>
    %cst_12 = arith.constant 1.000000e+00 : f32
    %20 = vector.broadcast %cst_12 : f32 to vector<16x64xf32>
    %21 = arith.divf %20, %19 : vector<16x64xf32>
    %cst_13 = arith.constant 1.06140542 : f32
    %22 = vector.broadcast %cst_13 : f32 to vector<16x64xf32>
    %23 = arith.mulf %22, %21 : vector<16x64xf32>
    %cst_14 = arith.constant -1.45315206 : f32
    %24 = vector.broadcast %cst_14 : f32 to vector<16x64xf32>
    %25 = arith.addf %23, %24 : vector<16x64xf32>
    %26 = arith.mulf %25, %21 : vector<16x64xf32>
    %cst_15 = arith.constant 1.42141378 : f32
    %27 = vector.broadcast %cst_15 : f32 to vector<16x64xf32>
    %28 = arith.addf %26, %27 : vector<16x64xf32>
    %29 = arith.mulf %28, %21 : vector<16x64xf32>
    %cst_16 = arith.constant -0.284496725 : f32
    %30 = vector.broadcast %cst_16 : f32 to vector<16x64xf32>
    %31 = arith.addf %29, %30 : vector<16x64xf32>
    %32 = arith.mulf %31, %21 : vector<16x64xf32>
    %cst_17 = arith.constant 0.254829586 : f32
    %33 = vector.broadcast %cst_17 : f32 to vector<16x64xf32>
    %34 = arith.addf %32, %33 : vector<16x64xf32>
    %35 = arith.mulf %34, %21 : vector<16x64xf32>
    %cst_18 = arith.constant 0.000000e+00 : f32
    %36 = vector.broadcast %cst_18 : f32 to vector<16x64xf32>
    %37 = arith.subf %36, %15 : vector<16x64xf32>
    %38 = arith.mulf %37, %15 : vector<16x64xf32>
    %39 = math.exp %38 : vector<16x64xf32>
    %40 = arith.mulf %35, %39 : vector<16x64xf32>
    %cst_19 = arith.constant 1.000000e+00 : f32
    %41 = vector.broadcast %cst_19 : f32 to vector<16x64xf32>
    %42 = arith.subf %41, %40 : vector<16x64xf32>
    %43 = arith.mulf %14, %42 : vector<16x64xf32>
    %cst_20 = arith.constant 1.000000e+00 : f32
    %44 = vector.broadcast %cst_20 : f32 to vector<16x64xf32>
    %45 = arith.addf %44, %43 : vector<16x64xf32>
    %46 = arith.mulf %7, %45 : vector<16x64xf32>
    %47 = arith.truncf %46 : vector<16x64xf32> to vector<16x64xbf16>
    %c0_21 = arith.constant 0 : index
    %c0_22 = arith.constant 0 : index
    %48 = vector.load %arg4[%c0_21, %c0_22] : memref<64x32xbf16, #tpu.memory_space<vmem>>, vector<64x32xbf16>
    %cst_23 = arith.constant dense<0.000000e+00> : vector<16x32xf32>
    %49 = tpu.matmul %47, %48, %cst_23 {dimension_numbers = #tpu.dot_dimension_numbers<[1], [0], [0], [1], [0, 0, 1, 1], [], []>} : vector<16x64xbf16>, vector<64x32xbf16>, vector<16x32xf32> -> vector<16x32xf32>
    %c0_24 = arith.constant 0 : index
    %c0_25 = arith.constant 0 : index
    %50 = vector.load %arg5[%c0_24, %c0_25] : memref<1x32xf32, #tpu.memory_space<vmem>>, vector<1x32xf32>
    %51 = vector.broadcast %50 : vector<1x32xf32> to vector<16x32xf32>
    %52 = arith.addf %49, %51 : vector<16x32xf32>
    %53 = arith.extf %0 : vector<16x32xbf16> to vector<16x32xf32>
    %54 = arith.addf %52, %53 : vector<16x32xf32>
    %c0_26 = arith.constant 0 : index
    %c0_27 = arith.constant 0 : index
    %55 = vector.load %arg6[%c0_26, %c0_27] : memref<1x32xf32, #tpu.memory_space<vmem>>, vector<1x32xf32>
    %c0_28 = arith.constant 0 : index
    %c0_29 = arith.constant 0 : index
    %56 = vector.load %arg7[%c0_28, %c0_29] : memref<1x32xf32, #tpu.memory_space<vmem>>, vector<1x32xf32>
    %cst_30 = arith.constant dense<0.000000e+00> : vector<16xf32>
    %57 = vector.multi_reduction <add>, %54, %cst_30 [1] : vector<16x32xf32> to vector<16xf32>
    %58 = vector.shape_cast %57 : vector<16xf32> to vector<16x1xf32>
    %cst_31 = arith.constant 3.200000e+01 : f32
    %59 = vector.broadcast %cst_31 : f32 to vector<16x1xf32>
    %60 = arith.divf %58, %59 : vector<16x1xf32>
    %61 = vector.broadcast %60 : vector<16x1xf32> to vector<16x32xf32>
    %62 = arith.subf %54, %61 : vector<16x32xf32>
    %63 = arith.mulf %62, %62 : vector<16x32xf32>
    %cst_32 = arith.constant dense<0.000000e+00> : vector<16xf32>
    %64 = vector.multi_reduction <add>, %63, %cst_32 [1] : vector<16x32xf32> to vector<16xf32>
    %65 = vector.shape_cast %64 : vector<16xf32> to vector<16x1xf32>
    %cst_33 = arith.constant 3.200000e+01 : f32
    %66 = vector.broadcast %cst_33 : f32 to vector<16x1xf32>
    %67 = arith.divf %65, %66 : vector<16x1xf32>
    %68 = vector.broadcast %60 : vector<16x1xf32> to vector<16x32xf32>
    %69 = arith.subf %54, %68 : vector<16x32xf32>
    %cst_34 = arith.constant 9.99999996E-13 : f32
    %70 = vector.broadcast %cst_34 : f32 to vector<16x1xf32>
    %71 = arith.addf %67, %70 : vector<16x1xf32>
    %72 = math.rsqrt %71 : vector<16x1xf32>
    %73 = vector.broadcast %72 : vector<16x1xf32> to vector<16x32xf32>
    %74 = arith.mulf %69, %73 : vector<16x32xf32>
    %75 = vector.broadcast %55 : vector<1x32xf32> to vector<16x32xf32>
    %76 = arith.mulf %74, %75 : vector<16x32xf32>
    %77 = vector.broadcast %56 : vector<1x32xf32> to vector<16x32xf32>
    %78 = arith.addf %76, %77 : vector<16x32xf32>
    %79 = arith.truncf %78 : vector<16x32xf32> to vector<16x32xbf16>
    %c0_35 = arith.constant 0 : index
    %c0_36 = arith.constant 0 : index
    %80 = vector.load %arg8[%c0_35, %c0_36] : memref<16x32xbf16, #tpu.memory_space<vmem>>, vector<16x32xbf16>
    tpu.vector_store %arg8[%c0_35, %c0_36], %79 {strides = array<i32>} : memref<16x32xbf16, #tpu.memory_space<vmem>>, vector<16x32xbf16>,
    return
  }
  func.func @transform_0(%arg0: i32) -> (i32, i32) {
    %c0_i32 = arith.constant 0 : i32
    %c0_i32_0 = arith.constant 0 : i32
    return %arg0, %c0_i32 : i32, i32
  }
  func.func @transform_1(%arg0: i32) -> (i32, i32) {
    %c0_i32 = arith.constant 0 : i32
    %c0_i32_0 = arith.constant 0 : i32
    %c0_i32_1 = arith.constant 0 : i32
    return %c0_i32, %c0_i32_0 : i32, i32
  }
  func.func @transform_2(%arg0: i32) -> (i32, i32) {
    %c0_i32 = arith.constant 0 : i32
    %c0_i32_0 = arith.constant 0 : i32
    %c0_i32_1 = arith.constant 0 : i32
    return %c0_i32, %c0_i32_0 : i32, i32
  }
  func.func @transform_3(%arg0: i32) -> (i32, i32) {
    %c0_i32 = arith.constant 0 : i32
    %c0_i32_0 = arith.constant 0 : i32
    %c0_i32_1 = arith.constant 0 : i32
    return %c0_i32, %c0_i32_0 : i32, i32
  }
  func.func @transform_4(%arg0: i32) -> (i32, i32) {
    %c0_i32 = arith.constant 0 : i32
    %c0_i32_0 = arith.constant 0 : i32
    %c0_i32_1 = arith.constant 0 : i32
    return %c0_i32, %c0_i32_0 : i32, i32
  }
  func.func @transform_5(%arg0: i32) -> (i32, i32) {
    %c0_i32 = arith.constant 0 : i32
    %c0_i32_0 = arith.constant 0 : i32
    %c0_i32_1 = arith.constant 0 : i32
    return %c0_i32, %c0_i32_0 : i32, i32
  }
  func.func @transform_6(%arg0: i32) -> (i32, i32) {
    %c0_i32 = arith.constant 0 : i32
    %c0_i32_0 = arith.constant 0 : i32
    %c0_i32_1 = arith.constant 0 : i32
    return %c0_i32, %c0_i32_0 : i32, i32
  }
  func.func @transform_7(%arg0: i32) -> (i32, i32) {
    %c0_i32 = arith.constant 0 : i32
    %c0_i32_0 = arith.constant 0 : i32
    return %arg0, %c0_i32 : i32, i32
  }
}

module attributes {stable_mosaic.version = 11 : i64} {
  func.func @_head_kernel(%arg0: i32, %arg1: memref<2x32xbf16, #tpu.memory_space<vmem>>, %arg2: memref<32x32xbf16, #tpu.memory_space<vmem>>, %arg3: memref<1x32xf32, #tpu.memory_space<vmem>>, %arg4: memref<32x128xbf16, #tpu.memory_space<vmem>>, %arg5: memref<1x128xf32, #tpu.memory_space<vmem>>, %arg6: memref<2x128xf32, #tpu.memory_space<vmem>>) attributes {dimension_semantics = [#tpu.dimension_semantics<arbitrary>], iteration_bounds = array<i64: 1>, scalar_prefetch = 0 : i64, scratch_operands = 0 : i64, tpu.core_type = #tpu.core_type<tc>, window_params = [{pipeline_mode = #tpu.pipeline_mode<synchronous>, transform_indices = @transform_0, window_bounds = array<i64: 2, 32>}, {pipeline_mode = #tpu.pipeline_mode<synchronous>, transform_indices = @transform_1, window_bounds = array<i64: 32, 32>}, {pipeline_mode = #tpu.pipeline_mode<synchronous>, transform_indices = @transform_2, window_bounds = array<i64: 1, 32>}, {pipeline_mode = #tpu.pipeline_mode<synchronous>, transform_indices = @transform_3, window_bounds = array<i64: 32, 128>}, {pipeline_mode = #tpu.pipeline_mode<synchronous>, transform_indices = @transform_4, window_bounds = array<i64: 1, 128>}, {pipeline_mode = #tpu.pipeline_mode<synchronous>, transform_indices = @transform_5, window_bounds = array<i64: 2, 128>}]} {
    %c0 = arith.constant 0 : index
    %c0_0 = arith.constant 0 : index
    %0 = vector.load %arg1[%c0, %c0_0] : memref<2x32xbf16, #tpu.memory_space<vmem>>, vector<2x32xbf16>
    %c0_1 = arith.constant 0 : index
    %c0_2 = arith.constant 0 : index
    %1 = vector.load %arg2[%c0_1, %c0_2] : memref<32x32xbf16, #tpu.memory_space<vmem>>, vector<32x32xbf16>
    %cst = arith.constant dense<0.000000e+00> : vector<2x32xf32>
    %2 = tpu.matmul %0, %1, %cst {dimension_numbers = #tpu.dot_dimension_numbers<[1], [0], [0], [1], [0, 0, 1, 1], [], []>} : vector<2x32xbf16>, vector<32x32xbf16>, vector<2x32xf32> -> vector<2x32xf32>
    %c0_3 = arith.constant 0 : index
    %c0_4 = arith.constant 0 : index
    %3 = vector.load %arg3[%c0_3, %c0_4] : memref<1x32xf32, #tpu.memory_space<vmem>>, vector<1x32xf32>
    %4 = vector.broadcast %3 : vector<1x32xf32> to vector<2x32xf32>
    %5 = arith.addf %2, %4 : vector<2x32xf32>
    %6 = math.tanh %5 : vector<2x32xf32>
    %7 = arith.truncf %6 : vector<2x32xf32> to vector<2x32xbf16>
    %c0_5 = arith.constant 0 : index
    %c0_6 = arith.constant 0 : index
    %8 = vector.load %arg4[%c0_5, %c0_6] : memref<32x128xbf16, #tpu.memory_space<vmem>>, vector<32x128xbf16>
    %cst_7 = arith.constant dense<0.000000e+00> : vector<2x128xf32>
    %9 = tpu.matmul %7, %8, %cst_7 {dimension_numbers = #tpu.dot_dimension_numbers<[1], [0], [0], [1], [0, 0, 1, 1], [], []>} : vector<2x32xbf16>, vector<32x128xbf16>, vector<2x128xf32> -> vector<2x128xf32>
    %c0_8 = arith.constant 0 : index
    %c0_9 = arith.constant 0 : index
    %10 = vector.load %arg5[%c0_8, %c0_9] : memref<1x128xf32, #tpu.memory_space<vmem>>, vector<1x128xf32>
    %11 = vector.broadcast %10 : vector<1x128xf32> to vector<2x128xf32>
    %12 = arith.addf %9, %11 : vector<2x128xf32>
    %c0_10 = arith.constant 0 : index
    %c0_11 = arith.constant 0 : index
    %13 = vector.load %arg6[%c0_10, %c0_11] : memref<2x128xf32, #tpu.memory_space<vmem>>, vector<2x128xf32>
    tpu.vector_store %arg6[%c0_10, %c0_11], %12 {strides = array<i32>} : memref<2x128xf32, #tpu.memory_space<vmem>>, vector<2x128xf32>,
    return
  }
  func.func @transform_0(%arg0: i32) -> (i32, i32) {
    %c0_i32 = arith.constant 0 : i32
    %c0_i32_0 = arith.constant 0 : i32
    %c0_i32_1 = arith.constant 0 : i32
    return %c0_i32, %c0_i32_0 : i32, i32
  }
  func.func @transform_1(%arg0: i32) -> (i32, i32) {
    %c0_i32 = arith.constant 0 : i32
    %c0_i32_0 = arith.constant 0 : i32
    %c0_i32_1 = arith.constant 0 : i32
    return %c0_i32, %c0_i32_0 : i32, i32
  }
  func.func @transform_2(%arg0: i32) -> (i32, i32) {
    %c0_i32 = arith.constant 0 : i32
    %c0_i32_0 = arith.constant 0 : i32
    %c0_i32_1 = arith.constant 0 : i32
    return %c0_i32, %c0_i32_0 : i32, i32
  }
  func.func @transform_3(%arg0: i32) -> (i32, i32) {
    %c0_i32 = arith.constant 0 : i32
    %c0_i32_0 = arith.constant 0 : i32
    %c0_i32_1 = arith.constant 0 : i32
    return %c0_i32, %c0_i32_0 : i32, i32
  }
  func.func @transform_4(%arg0: i32) -> (i32, i32) {
    %c0_i32 = arith.constant 0 : i32
    %c0_i32_0 = arith.constant 0 : i32
    %c0_i32_1 = arith.constant 0 : i32
    return %c0_i32, %c0_i32_0 : i32, i32
  }
  func.func @transform_5(%arg0: i32) -> (i32, i32) {
    %c0_i32 = arith.constant 0 : i32
    %c0_i32_0 = arith.constant 0 : i32
    %c0_i32_1 = arith.constant 0 : i32
    return %c0_i32, %c0_i32_0 : i32, i32
  }
}

</mosaic_0001>

<llo_original>
// kernel: _lambda_.6
$region0: #{_lambda_.6}
  #allocation0 [shape = 'u32[]', space=smem, size = 0x4, offset = 0x4, fixed_abs, tag = 'smem constant byte address 0x4 - core index']
  #allocation1 [shape = 'u32[144,128]{1,0:T(1,128)}', space=vmem, size = 0x12000, scoped, tag = 'internal scratch']
  %s0 = inlined_call_operand.vmem [shape: bf16[32,32], index: 0, kind: input, shape index: {}]
  %s1 = inlined_call_operand.vmem [shape: f32[1,32], index: 1, kind: input, shape index: {}]
  %s2 = inlined_call_operand.vmem [shape: f32[1,32], index: 2, kind: input, shape index: {}]
  %s3 = inlined_call_operand.vmem [shape: bf16[32,32], index: 3, kind: output, shape index: {}]
  %s4 = sld [smem:[#allocation0]]
  $region45: #{_lambda_.6} parent=0
    _
  %s6 = ssub.s32 1, %s4
  %s7 = scalar_select 0, %s6, %s4
  loop: start=0, step=1, limit=4
  $region2: #{_lambda_.6} parent=0 // loop_pre_header
    _
  $region3: #{_lambda_.6} parent=0 // loop_header
    %s9 = sphi 0, %s13
    %p10 = scmp.ge.s32.totalorder %s9, 4
    %s19 = sphi 0, %s21
    %s22 = sphi 0, %s19
    %s23 = sphi 0, %s22
    %s39 = sphi 0, %s23
    %s43 = sphi 0, %s43
    %s45 = sphi 0, %s43
    %s46 = sphi 0, %s45
    %s60 = sphi 0, %s46
    %s64 = sphi 0, %s64
    %s66 = sphi 0, %s64
    %s67 = sphi 0, %s66
    %s81 = sphi 0, %s67
    %s87 = sphi 0, %s89
    %s90 = sphi 0, %s87
    %s91 = sphi 0, %s90
    %s107 = sphi 0, %s91
  $region4: #{_lambda_.6} parent=0 // loop_header_branch
    %12 = sbr.rel (%p10) target = $region8
  $region5: #{_lambda_.6} parent=0 // loop_body
    %s14 = ssub.s32 %s9, 1
    %s15 = ssub.s32 %s9, 2
    %s16 = sadd.s32 %s9, 1
    %s17 = ssub.s32 %s9, %s16
    %p18 = scmp.eq.s32.totalorder %s17, 0
    %s20 = sadd.s32 %s19, 1
    %s21 = scalar_select %p18, %s19, %s20
    %p24 = pneg %p18
    %p25 = scmp.eq.s32.totalorder %s9, 1
    %p26 = por %p24, %p25
    %p27 = scmp.ne.s32.totalorder %s19, %s22
    %p28 = scmp.eq.s32.totalorder %s9, 0
    %p29 = por %p27, %p28
    %p30 = scmp.ne.s32.totalorder %s19, %s22
    %p31 = scmp.eq.s32.totalorder %s14, 1
    %p32 = por %p30, %p31
    %p33 = scmp.ne.s32.totalorder %s22, %s23
    %p34 = scmp.eq.s32.totalorder %s14, 0
    %p35 = por %p33, %p34
    %p36 = scmp.ne.s32.totalorder %s22, %s23
    %p37 = scmp.eq.s32.totalorder %s15, 1
    %p38 = por %p36, %p37
    %p40 = scmp.ne.s32.totalorder %s23, %s39
    %p41 = scmp.eq.s32.totalorder %s15, 0
    %p42 = por %p40, %p41
    %s44 = sadd.s32 %s43, 1
    %p47 = scmp.eq.s32.totalorder %s9, 1
    %p48 = scmp.ne.s32.totalorder %s43, %s45
    %p49 = scmp.eq.s32.totalorder %s9, 0
    %p50 = por %p48, %p49
    %p51 = scmp.ne.s32.totalorder %s43, %s45
    %p52 = scmp.eq.s32.totalorder %s14, 1
    %p53 = por %p51, %p52
    %p54 = scmp.ne.s32.totalorder %s45, %s46
    %p55 = scmp.eq.s32.totalorder %s14, 0
    %p56 = por %p54, %p55
    %p57 = scmp.ne.s32.totalorder %s45, %s46
    %p58 = scmp.eq.s32.totalorder %s15, 1
    %p59 = por %p57, %p58
    %p61 = scmp.ne.s32.totalorder %s46, %s60
    %p62 = scmp.eq.s32.totalorder %s15, 0
    %p63 = por %p61, %p62
    %s65 = sadd.s32 %s64, 1
    %p68 = scmp.eq.s32.totalorder %s9, 1
    %p69 = scmp.ne.s32.totalorder %s64, %s66
    %p70 = scmp.eq.s32.totalorder %s9, 0
    %p71 = por %p69, %p70
    %p72 = scmp.ne.s32.totalorder %s64, %s66
    %p73 = scmp.eq.s32.totalorder %s14, 1
    %p74 = por %p72, %p73
    %p75 = scmp.ne.s32.totalorder %s66, %s67
    %p76 = scmp.eq.s32.totalorder %s14, 0
    %p77 = por %p75, %p76
    %p78 = scmp.ne.s32.totalorder %s66, %s67
    %p79 = scmp.eq.s32.totalorder %s15, 1
    %p80 = por %p78, %p79
    %p82 = scmp.ne.s32.totalorder %s67, %s81
    %p83 = scmp.eq.s32.totalorder %s15, 0
    %p84 = por %p82, %p83
    %s85 = ssub.s32 %s9, %s16
    %p86 = scmp.eq.s32.totalorder %s85, 0
    %s88 = sadd.s32 %s87, 1
    %s89 = scalar_select %p86, %s87, %s88
    %p92 = pneg %p86
    %p93 = scmp.eq.s32.totalorder %s9, 1
    %p94 = por %p92, %p93
    %p95 = scmp.ne.s32.totalorder %s87, %s90
    %p96 = scmp.eq.s32.totalorder %s9, 0
    %p97 = por %p95, %p96
    %p98 = scmp.ne.s32.totalorder %s87, %s90
    %p99 = scmp.eq.s32.totalorder %s14, 1
    %p100 = por %p98, %p99
    %p101 = scmp.ne.s32.totalorder %s90, %s91
    %p102 = scmp.eq.s32.totalorder %s14, 0
    %p103 = por %p101, %p102
    %p104 = scmp.ne.s32.totalorder %s90, %s91
    %p105 = scmp.eq.s32.totalorder %s15, 1
    %p106 = por %p104, %p105
    %p108 = scmp.ne.s32.totalorder %s91, %s107
    %p109 = scmp.eq.s32.totalorder %s15, 0
    %p110 = por %p108, %p109
    %p111 = scmp.le.s32.totalorder 1, %s9
    %p112 = scmp.lt.s32.totalorder %s9, 3
    %p113 = pnand %p111, %p112
    %p114 = pneg %p113
    // Predicated region
    $region9: #{_lambda_.6} parent=5 // pred_check
      _
    $region10: #{_lambda_.6} parent=5 // pred_check_branch
      %116 = sbr.rel (%p113) target = $region12
    $region11: #{_lambda_.6} parent=5 // pred_region
      %s117 = ssub.s32 %s9, 1
      // Predicated region
      $region13: #{_lambda_.6} parent=11 // pred_check
        %p118 = pneg %p56
      $region14: #{_lambda_.6} parent=11 // pred_check_branch
        %120 = sbr.rel (%p118) target = $region16
      $region15: #{_lambda_.6} parent=11 // pred_region
        _
      $region16: #{_lambda_.6} parent=11 // pred_fallthru
        _
      // Predicated region
      $region17: #{_lambda_.6} parent=11 // pred_check
        %p121 = pneg %p77
      $region18: #{_lambda_.6} parent=11 // pred_check_branch
        %123 = sbr.rel (%p121) target = $region20
      $region19: #{_lambda_.6} parent=11 // pred_region
        _
      $region20: #{_lambda_.6} parent=11 // pred_fallthru
        _
    $region12: #{_lambda_.6} parent=5 // pred_fallthru
      _
    %p124 = scmp.lt.s32.totalorder %s9, 2
    // Predicated region
    $region21: #{_lambda_.6} parent=5 // pred_check
      %p125 = pneg %p124
    $region22: #{_lambda_.6} parent=5 // pred_check_branch
      %127 = sbr.rel (%p125) target = $region24
    $region23: #{_lambda_.6} parent=5 // pred_region
      // Predicated region
      $region25: #{_lambda_.6} parent=23 // pred_check
        %p128 = pneg %p29
      $region26: #{_lambda_.6} parent=23 // pred_check_branch
        %130 = sbr.rel (%p128) target = $region28
      $region27: #{_lambda_.6} parent=23 // pred_region
        %s131 = smul.u32 2, %s9
        %p132 = scmp.lt.s32.totalorder %s131, 3
        %s133 = scalar_select %p132, %s131, 3
        %s134 = smul.addr %s133, 4
        %s135 = scalar_lea.vmem %s0, %s134
        %s136 = smul.u32 2, %s9
      $region28: #{_lambda_.6} parent=23 // pred_fallthru
        _
    $region24: #{_lambda_.6} parent=5 // pred_fallthru
      _
    %p137 = scmp.le.s32.totalorder 1, %s9
    %p138 = scmp.lt.s32.totalorder %s9, 3
    %p139 = pnand %p137, %p138
    %p140 = pneg %p139
    // Predicated region
    $region29: #{_lambda_.6} parent=5 // pred_check
      _
    $region30: #{_lambda_.6} parent=5 // pred_check_branch
      %142 = sbr.rel (%p139) target = $region32
    $region31: #{_lambda_.6} parent=5 // pred_region
      %s143 = ssub.s32 %s9, 1
      %s144 = smul.u32 2, %s14
      %p145 = scmp.lt.s32.totalorder %s144, 3
      %s146 = scalar_select %p145, %s144, 3
      %s147 = smul.addr %s146, 4
      %s148 = scalar_lea.vmem %s0, %s147
      %p149 = pneg %p35
      %p150 = pneg %p32
      %p151 = pneg %p56
      %p152 = pneg %p53
      %p153 = pneg %p77
      %p154 = pneg %p74
      %p155 = pneg %p103
      %p156 = pneg %p100
      %s157 = smul.u32 2, %s14
      %p158 = scmp.lt.s32.totalorder %s157, 3
      %s159 = scalar_select %p158, %s157, 3
      %s160 = smul.addr %s159, 4
      %s161 = scalar_lea.vmem %s3, %s160
      %s162 = smul.u32 2, %s14
      %p163 = scmp.lt.s32.totalorder %s162, 3
      %s164 = scalar_select %p163, %s162, 3
      %s165 = smul.addr %s164, 4
      %s166 = scalar_lea.vmem %s0, %s165
      %s167 = smul.u32 2, %s14
      %s168 = smul.u32 2, %s14
      %p169 = scmp.lt.s32.totalorder %s168, 3
      %s170 = scalar_select %p169, %s168, 3
      %s171 = smul.addr %s170, 4
      %s172 = scalar_lea.vmem %s3, %s171
      %s173 = smul.u32 2, %s14
      %v174 = vld [vmem:[%s166] sm:$0xf]
      %v175 = vld [vmem:[%s166 + $0x4] sm:$0xf]
      %v176 = vunpack.c.l.bf16 %v174
      %v177 = vunpack.c.l.bf16 %v175
      %v178 = vld [vmem:[%s1] sm:$0x1]
      %v179 = vld [vmem:[%s2] sm:$0x1]
      %vm180 = vcmask 261120
      %v181 = vsel %vm180, %v176, 0.0
      %182 = vadd.xlane.f32.xlu0 %v181
      %v183 = vpop.xlane.xlu0 %182
      %v184 = vsel %vm180, %v177, 0.0
      %185 = vadd.xlane.f32.xlu0 %v184
      %v186 = vpop.xlane.xlu0 %185
      %v187 = vrcp.pop 32.0
      %v188 = vmul.f32 %v183, %v187
      %v189 = vmul.f32 %v186, %v187
      %v190 = vsub.f32 %v176, %v188
      %v191 = vsub.f32 %v177, %v189
      %v192 = vmul.f32 %v190, %v190
      %v193 = vmul.f32 %v191, %v191
      %v194 = vsel %vm180, %v192, 0.0
      %195 = vadd.xlane.f32.xlu0 %v194
      %v196 = vpop.xlane.xlu0 %195
      %v197 = vsel %vm180, %v193, 0.0
      %198 = vadd.xlane.f32.xlu0 %v197
      %v199 = vpop.xlane.xlu0 %198
      %v200 = vmul.f32 %v196, %v187
      %v201 = vmul.f32 %v199, %v187
      %v202 = vadd.f32 %v200, 1e-12
      %v203 = vadd.f32 %v201, 1e-12
      %v204 = vrsqrt.pop %v202
      %v205 = vrsqrt.pop %v203
      %v206 = vmul.f32 %v190, %v204
      %v207 = vmul.f32 %v191, %v205
      %v209 = vlaneseq
      %v210 = vshrl.u32 %v209, 7
      %v211 = vsub.s32 0, %v210
      %v212 = vrot.slane %v178, %v211
      %v214 = vmul.f32 %v206, %v212
      %v215 = vmul.f32 %v207, %v212
      %v217 = vlaneseq
      %v218 = vshrl.u32 %v217, 7
      %v219 = vsub.s32 0, %v218
      %v220 = vrot.slane %v179, %v219
      %v222 = vadd.f32 %v214, %v220
      %v223 = vadd.f32 %v215, %v220
      %v224 = vpack.c.bf16 %v223, %v222
      %v226 = vunpack.c.l.b16 %v224
      %v227 = vunpack.c.h.b16 %v224
      %v228 = vpack.c.b16 %v226, %v226
      %v229 = vpack.c.b16 %v227, %v227
      %vm232 = vcmask 257024
      %233 = vst.msk [vmem:[%s172] sm:$0xf] %vm232, %v228
      %234 = vst.msk [vmem:[%s172 + $0x4] sm:$0xf] %vm232, %v229
      %s235 = smul.u32 2, %s14
      %p236 = scmp.lt.s32.totalorder %s235, 3
      %s237 = scalar_select %p236, %s235, 3
      %s238 = smul.addr %s237, 4
      %s239 = scalar_lea.vmem %s3, %s238
      // Predicated region
      $region33: #{_lambda_.6} parent=31 // pred_check
        %p240 = pneg %p100
      $region34: #{_lambda_.6} parent=31 // pred_check_branch
        %242 = sbr.rel (%p240) target = $region36
      $region35: #{_lambda_.6} parent=31 // pred_region
        %s243 = smul.u32 2, %s14
      $region36: #{_lambda_.6} parent=31 // pred_fallthru
        _
    $region32: #{_lambda_.6} parent=5 // pred_fallthru
      _
    %p244 = scmp.le.s32.totalorder 2, %s9
    // Predicated region
    $region37: #{_lambda_.6} parent=5 // pred_check
      %p245 = pneg %p244
    $region38: #{_lambda_.6} parent=5 // pred_check_branch
      %247 = sbr.rel (%p245) target = $region40
    $region39: #{_lambda_.6} parent=5 // pred_region
      %s248 = ssub.s32 %s9, 2
      // Predicated region
      $region41: #{_lambda_.6} parent=39 // pred_check
        %p249 = pneg %p106
      $region42: #{_lambda_.6} parent=39 // pred_check_branch
        %251 = sbr.rel (%p249) target = $region44
      $region43: #{_lambda_.6} parent=39 // pred_region
        %s252 = smul.u32 2, %s15
        %p253 = scmp.lt.s32.totalorder %s252, 3
        %s254 = scalar_select %p253, %s252, 3
        %s255 = smul.addr %s254, 4
        %s256 = scalar_lea.vmem %s3, %s255
      $region44: #{_lambda_.6} parent=39 // pred_fallthru
        _
    $region40: #{_lambda_.6} parent=5 // pred_fallthru
      _
  $region6: #{_lambda_.6} parent=0 // loop_footer
    %s13 = sadd.s32 1, %s9
  $region7: #{_lambda_.6} parent=0 // loop_footer_branch
    %8 = sbr.rel target = $region3
  $region8: #{_lambda_.6} parent=0 // loop_exit
    _

// kernel: _lambda_.11
$region0: #{_lambda_.11}
  #allocation0 [shape = 'u32[]', space=smem, size = 0x4, offset = 0x4, fixed_abs, tag = 'smem constant byte address 0x4 - core index']
  #allocation1 [shape = 'u32[144,128]{1,0:T(1,128)}', space=vmem, size = 0x12000, scoped, tag = 'internal scratch']
  %s0 = inlined_call_operand.vmem [shape: bf16[2,32], index: 0, kind: input, shape index: {}]
  %s1 = inlined_call_operand.vmem [shape: bf16[32,32], index: 1, kind: input, shape index: {}]
  %s2 = inlined_call_operand.vmem [shape: f32[1,32], index: 2, kind: input, shape index: {}]
  %s3 = inlined_call_operand.vmem [shape: bf16[32,128], index: 3, kind: input, shape index: {}]
  %s4 = inlined_call_operand.vmem [shape: f32[1,128], index: 4, kind: input, shape index: {}]
  %s5 = inlined_call_operand.hbm [shape: f32[2,128], index: 5, kind: output, shape index: {}]
  %s6 = sld [smem:[#allocation0]]
  $region30: #{_lambda_.11} parent=0
    _
  %s8 = ssub.s32 1, %s6
  %s9 = scalar_select 0, %s8, %s6
  $region1: #{_lambda_.11} parent=0
    #allocation2 [shape = 'u8[1024]{0}', space=vmem, size = 0x400, scoped, tag = 'output window, operand 0, single buffered']
    #allocation3 [shape = 's32[1]{0}', space=sflag, size = 0x4, scoped, tag = 'scoped memory for _lambda_.11']
    %10 = vsyncpa [#allocation3], 0
    // Predicated region
    $region2: #{_lambda_.11} parent=1 // pred_check
      _
    $region3: #{_lambda_.11} parent=1 // pred_check_branch
      %12 = sbr.rel (0) target = $region5
    $region4: #{_lambda_.11} parent=1 // pred_region
      _
    $region5: #{_lambda_.11} parent=1 // pred_fallthru
      _
    // Predicated region
    $region6: #{_lambda_.11} parent=1 // pred_check
      _
    $region7: #{_lambda_.11} parent=1 // pred_check_branch
      %14 = sbr.rel (0) target = $region9
    $region8: #{_lambda_.11} parent=1 // pred_region
      _
    $region9: #{_lambda_.11} parent=1 // pred_fallthru
      _
    // Predicated region
    $region10: #{_lambda_.11} parent=1 // pred_check
      _
    $region11: #{_lambda_.11} parent=1 // pred_check_branch
      %16 = sbr.rel (0) target = $region13
    $region12: #{_lambda_.11} parent=1 // pred_region
      _
    $region13: #{_lambda_.11} parent=1 // pred_fallthru
      _
    // Predicated region
    $region14: #{_lambda_.11} parent=1 // pred_check
      _
    $region15: #{_lambda_.11} parent=1 // pred_check_branch
      %18 = sbr.rel (0) target = $region17
    $region16: #{_lambda_.11} parent=1 // pred_region
      _
    $region17: #{_lambda_.11} parent=1 // pred_fallthru
      _
    // Predicated region
    $region18: #{_lambda_.11} parent=1 // pred_check
      _
    $region19: #{_lambda_.11} parent=1 // pred_check_branch
      %20 = sbr.rel (0) target = $region21
    $region20: #{_lambda_.11} parent=1 // pred_region
      _
    $region21: #{_lambda_.11} parent=1 // pred_fallthru
      _
    %v22 = vld [vmem:[%s0] sm:$0x1]
    %v23 = vld [vmem:[%s1] sm:$0xf]
    %v24 = vld [vmem:[%s1 + $0x4] sm:$0xf]
    %v25 = vld [vmem:[%s1 + $0x8] sm:$0xf]
    %v26 = vld [vmem:[%s1 + $0xc] sm:$0xf]
    %v27 = vld [vmem:[%s2] sm:$0x1]
    %v29 = vlaneseq
    %v30 = vshrl.u32 %v29, 7
    %v31 = vsub.s32 0, %v30
    %v32 = vrot.slane %v27, %v31
    %v38 = vunpack.c.l.b16 %v23
    %v39 = vunpack.c.l.b16 %v24
    %v40 = vunpack.c.l.b16 %v25
    %v41 = vunpack.c.l.b16 %v26
    %v42 = vpack.c.b16 %v39, %v38
    %v43 = vpack.c.b16 %v41, %v40
    %vm46 = vcmask 261120
    %v48 = vsel %vm46, %v22, 0
    %50 = vmatprep.subr.bf16.mxu0 0
    %51 = vmatpush1.bf16.msra.mxu0 %v42
    %52 = vmatprep.subr.bf16.mxu0 0
    %53 = vmatpush1.bf16.msra.mxu0 %v43
    %54 = vmatprep.subr.bf16.mxu0 0
    %55 = vmatpush1.bf16.msra.mxu0 0
    %56 = vmatprep.subr.bf16.mxu0 0
    %57 = vmatpush1.bf16.msra.mxu0 0
    %58 = vmatprep.subr.bf16.mxu0 0
    %59 = vmatpush1.bf16.msra.mxu0 0
    %60 = vmatprep.subr.bf16.mxu0 0
    %61 = vmatpush1.bf16.msra.mxu0 0
    %62 = vmatprep.subr.bf16.mxu0 0
    %63 = vmatpush1.bf16.msra.mxu0 0
    %64 = vmatprep.subr.bf16.mxu0 0
    %65 = vmatpush1.bf16.msra.mxu0 0
    %66 = vmatprep.subr.bf16.mxu0 0
    %67 = vmatpush1.bf16.msra.mxu0 0
    %68 = vmatprep.subr.bf16.mxu0 0
    %69 = vmatpush1.bf16.msra.mxu0 0
    %70 = vmatprep.subr.bf16.mxu0 0
    %71 = vmatpush1.bf16.msra.mxu0 0
    %72 = vmatprep.subr.bf16.mxu0 0
    %73 = vmatpush1.bf16.msra.mxu0 0
    %74 = vmatprep.subr.bf16.mxu0 0
    %75 = vmatpush1.bf16.msra.mxu0 0
    %76 = vmatprep.subr.bf16.mxu0 0
    %77 = vmatpush1.bf16.msra.mxu0 0
    %78 = vmatprep.subr.bf16.mxu0 0
    %79 = vmatpush1.bf16.msra.mxu0 0
    %80 = vmatprep.subr.bf16.mxu0 0
    %81 = vmatpush1.bf16.msra.mxu0 0
    %82 = vmatprep.mubr.bf16.mxu0 0
    %83 = vmatmul.mubr.bf16.gmra.mrb[0].mxu0 %v48
    %v84 = vpop.f32.mrb[0].mxu0
    %v85 = vadd.f32 %v32, %v84
    %v86 = vpop.f32.mrb[0].mxu0
    %v87 = vpop.f32.mrb[0].mxu0
    %v88 = vpop.f32.mrb[0].mxu0
    %89 = vdwg.mxu0
    %v90 = vtanh.pop %v85
    %v91 = vpack.c.bf16 %v90, %v90
    %v92 = vld [vmem:[%s3] sm:$0xf]
    %v93 = vld [vmem:[%s3 + $0x4] sm:$0xf]
    %v94 = vld [vmem:[%s3 + $0x8] sm:$0xf]
    %v95 = vld [vmem:[%s3 + $0xc] sm:$0xf]
    %v96 = vld [vmem:[%s4] sm:$0x1]
    %v98 = vlaneseq
    %v99 = vshrl.u32 %v98, 7
    %v100 = vsub.s32 0, %v99
    %v101 = vrot.slane %v96, %v100
    %v107 = vunpack.c.l.b16 %v92
    %v108 = vunpack.c.l.b16 %v93
    %v109 = vunpack.c.l.b16 %v94
    %v110 = vunpack.c.l.b16 %v95
    %v111 = vpack.c.b16 %v108, %v107
    %v112 = vpack.c.b16 %v110, %v109
    %v116 = vsel %vm46, %v91, 0
    %118 = vmatprep.subr.bf16.mxu0 0
    %119 = vmatpush1.bf16.msra.mxu0 %v111
    %120 = vmatprep.subr.bf16.mxu0 0
    %121 = vmatpush1.bf16.msra.mxu0 %v112
    %122 = vmatprep.subr.bf16.mxu0 0
    %123 = vmatpush1.bf16.msra.mxu0 0
    %124 = vmatprep.subr.bf16.mxu0 0
    %125 = vmatpush1.bf16.msra.mxu0 0
    %126 = vmatprep.subr.bf16.mxu0 0
    %127 = vmatpush1.bf16.msra.mxu0 0
    %128 = vmatprep.subr.bf16.mxu0 0
    %129 = vmatpush1.bf16.msra.mxu0 0
    %130 = vmatprep.subr.bf16.mxu0 0
    %131 = vmatpush1.bf16.msra.mxu0 0
    %132 = vmatprep.subr.bf16.mxu0 0
    %133 = vmatpush1.bf16.msra.mxu0 0
    %134 = vmatprep.subr.bf16.mxu0 0
    %135 = vmatpush1.bf16.msra.mxu0 0
    %136 = vmatprep.subr.bf16.mxu0 0
    %137 = vmatpush1.bf16.msra.mxu0 0
    %138 = vmatprep.subr.bf16.mxu0 0
    %139 = vmatpush1.bf16.msra.mxu0 0
    %140 = vmatprep.subr.bf16.mxu0 0
    %141 = vmatpush1.bf16.msra.mxu0 0
    %142 = vmatprep.subr.bf16.mxu0 0
    %143 = vmatpush1.bf16.msra.mxu0 0
    %144 = vmatprep.subr.bf16.mxu0 0
    %145 = vmatpush1.bf16.msra.mxu0 0
    %146 = vmatprep.subr.bf16.mxu0 0
    %147 = vmatpush1.bf16.msra.mxu0 0
    %148 = vmatprep.subr.bf16.mxu0 0
    %149 = vmatpush1.bf16.msra.mxu0 0
    %150 = vmatprep.mubr.bf16.mxu0 0
    %151 = vmatmul.mubr.bf16.gmra.mrb[0].mxu0 %v116
    %v152 = vpop.f32.mrb[0].mxu0
    %v153 = vadd.f32 %v101, %v152
    %v154 = vpop.f32.mrb[0].mxu0
    %v155 = vpop.f32.mrb[0].mxu0
    %v156 = vpop.f32.mrb[0].mxu0
    %157 = vdwg.mxu0
    %158 = vst [vmem:[#allocation2] sm:$0x3] %v153
    // Predicated region
    $region22: #{_lambda_.11} parent=1 // pred_check
      _
    $region23: #{_lambda_.11} parent=1 // pred_check_branch
      %160 = sbr.rel (0) target = $region25
    $region24: #{_lambda_.11} parent=1 // pred_region
      %s162 = ssub.s32 32, 32
      %163 = vsyncadd [#allocation3], %s162
      %s165 = sshll.u32 [#allocation2], 4
      %s166 = int_to_ptr.vmem [resolvable:$true] %s165
      %168 = dma.vmem_to_hbm [thread:$0]  %s166, 32, %s5, [#allocation3]
    $region25: #{_lambda_.11} parent=1 // pred_fallthru
      _
    // Predicated region
    $region26: #{_lambda_.11} parent=1 // pred_check
      _
    $region27: #{_lambda_.11} parent=1 // pred_check_branch
      %170 = sbr.rel (0) target = $region29
    $region28: #{_lambda_.11} parent=1 // pred_region
      %171 = dma.done [#allocation3], 32
    $region29: #{_lambda_.11} parent=1 // pred_fallthru
      _
    %172 = vsyncpa [#allocation3], 1

// kernel: _lambda_.8
$region0: #{_lambda_.8}
  #allocation0 [shape = 'u32[]', space=smem, size = 0x4, offset = 0x4, fixed_abs, tag = 'smem constant byte address 0x4 - core index']
  #allocation1 [shape = 'u32[144,128]{1,0:T(1,128)}', space=vmem, size = 0x12000, scoped, tag = 'internal scratch']
  %s0 = inlined_call_operand.vmem [shape: bf16[32,32], index: 0, kind: input, shape index: {}]
  %s1 = inlined_call_operand.vmem [shape: bf16[32,64], index: 1, kind: input, shape index: {}]
  %s2 = inlined_call_operand.vmem [shape: f32[1,64], index: 2, kind: input, shape index: {}]
  %s3 = inlined_call_operand.vmem [shape: bf16[64,32], index: 3, kind: input, shape index: {}]
  %s4 = inlined_call_operand.vmem [shape: f32[1,32], index: 4, kind: input, shape index: {}]
  %s5 = inlined_call_operand.vmem [shape: f32[1,32], index: 5, kind: input, shape index: {}]
  %s6 = inlined_call_operand.vmem [shape: f32[1,32], index: 6, kind: input, shape index: {}]
  %s7 = inlined_call_operand.vmem [shape: bf16[32,32], index: 7, kind: output, shape index: {}]
  %s8 = sld [smem:[#allocation0]]
  $region61: #{_lambda_.8} parent=0
    _
  %s10 = ssub.s32 1, %s8
  %s11 = scalar_select 0, %s10, %s8
  loop: start=0, step=1, limit=4
  $region2: #{_lambda_.8} parent=0 // loop_pre_header
    _
  $region3: #{_lambda_.8} parent=0 // loop_header
    %s13 = sphi 0, %s17
    %p14 = scmp.ge.s32.totalorder %s13, 4
    %s23 = sphi 0, %s25
    %s26 = sphi 0, %s23
    %s27 = sphi 0, %s26
    %s43 = sphi 0, %s27
    %s47 = sphi 0, %s47
    %s49 = sphi 0, %s47
    %s50 = sphi 0, %s49
    %s64 = sphi 0, %s50
    %s68 = sphi 0, %s68
    %s70 = sphi 0, %s68
    %s71 = sphi 0, %s70
    %s85 = sphi 0, %s71
    %s89 = sphi 0, %s89
    %s91 = sphi 0, %s89
    %s92 = sphi 0, %s91
    %s106 = sphi 0, %s92
    %s110 = sphi 0, %s110
    %s112 = sphi 0, %s110
    %s113 = sphi 0, %s112
    %s127 = sphi 0, %s113
    %s131 = sphi 0, %s131
    %s133 = sphi 0, %s131
    %s134 = sphi 0, %s133
    %s148 = sphi 0, %s134
    %s152 = sphi 0, %s152
    %s154 = sphi 0, %s152
    %s155 = sphi 0, %s154
    %s169 = sphi 0, %s155
    %s175 = sphi 0, %s177
    %s178 = sphi 0, %s175
    %s179 = sphi 0, %s178
    %s195 = sphi 0, %s179
  $region4: #{_lambda_.8} parent=0 // loop_header_branch
    %16 = sbr.rel (%p14) target = $region8
  $region5: #{_lambda_.8} parent=0 // loop_body
    %s18 = ssub.s32 %s13, 1
    %s19 = ssub.s32 %s13, 2
    %s20 = sadd.s32 %s13, 1
    %s21 = ssub.s32 %s13, %s20
    %p22 = scmp.eq.s32.totalorder %s21, 0
    %s24 = sadd.s32 %s23, 1
    %s25 = scalar_select %p22, %s23, %s24
    %p28 = pneg %p22
    %p29 = scmp.eq.s32.totalorder %s13, 1
    %p30 = por %p28, %p29
    %p31 = scmp.ne.s32.totalorder %s23, %s26
    %p32 = scmp.eq.s32.totalorder %s13, 0
    %p33 = por %p31, %p32
    %p34 = scmp.ne.s32.totalorder %s23, %s26
    %p35 = scmp.eq.s32.totalorder %s18, 1
    %p36 = por %p34, %p35
    %p37 = scmp.ne.s32.totalorder %s26, %s27
    %p38 = scmp.eq.s32.totalorder %s18, 0
    %p39 = por %p37, %p38
    %p40 = scmp.ne.s32.totalorder %s26, %s27
    %p41 = scmp.eq.s32.totalorder %s19, 1
    %p42 = por %p40, %p41
    %p44 = scmp.ne.s32.totalorder %s27, %s43
    %p45 = scmp.eq.s32.totalorder %s19, 0
    %p46 = por %p44, %p45
    %s48 = sadd.s32 %s47, 1
    %p51 = scmp.eq.s32.totalorder %s13, 1
    %p52 = scmp.ne.s32.totalorder %s47, %s49
    %p53 = scmp.eq.s32.totalorder %s13, 0
    %p54 = por %p52, %p53
    %p55 = scmp.ne.s32.totalorder %s47, %s49
    %p56 = scmp.eq.s32.totalorder %s18, 1
    %p57 = por %p55, %p56
    %p58 = scmp.ne.s32.totalorder %s49, %s50
    %p59 = scmp.eq.s32.totalorder %s18, 0
    %p60 = por %p58, %p59
    %p61 = scmp.ne.s32.totalorder %s49, %s50
    %p62 = scmp.eq.s32.totalorder %s19, 1
    %p63 = por %p61, %p62
    %p65 = scmp.ne.s32.totalorder %s50, %s64
    %p66 = scmp.eq.s32.totalorder %s19, 0
    %p67 = por %p65, %p66
    %s69 = sadd.s32 %s68, 1
    %p72 = scmp.eq.s32.totalorder %s13, 1
    %p73 = scmp.ne.s32.totalorder %s68, %s70
    %p74 = scmp.eq.s32.totalorder %s13, 0
    %p75 = por %p73, %p74
    %p76 = scmp.ne.s32.totalorder %s68, %s70
    %p77 = scmp.eq.s32.totalorder %s18, 1
    %p78 = por %p76, %p77
    %p79 = scmp.ne.s32.totalorder %s70, %s71
    %p80 = scmp.eq.s32.totalorder %s18, 0
    %p81 = por %p79, %p80
    %p82 = scmp.ne.s32.totalorder %s70, %s71
    %p83 = scmp.eq.s32.totalorder %s19, 1
    %p84 = por %p82, %p83
    %p86 = scmp.ne.s32.totalorder %s71, %s85
    %p87 = scmp.eq.s32.totalorder %s19, 0
    %p88 = por %p86, %p87
    %s90 = sadd.s32 %s89, 1
    %p93 = scmp.eq.s32.totalorder %s13, 1
    %p94 = scmp.ne.s32.totalorder %s89, %s91
    %p95 = scmp.eq.s32.totalorder %s13, 0
    %p96 = por %p94, %p95
    %p97 = scmp.ne.s32.totalorder %s89, %s91
    %p98 = scmp.eq.s32.totalorder %s18, 1
    %p99 = por %p97, %p98
    %p100 = scmp.ne.s32.totalorder %s91, %s92
    %p101 = scmp.eq.s32.totalorder %s18, 0
    %p102 = por %p100, %p101
    %p103 = scmp.ne.s32.totalorder %s91, %s92
    %p104 = scmp.eq.s32.totalorder %s19, 1
    %p105 = por %p103, %p104
    %p107 = scmp.ne.s32.totalorder %s92, %s106
    %p108 = scmp.eq.s32.totalorder %s19, 0
    %p109 = por %p107, %p108
    %s111 = sadd.s32 %s110, 1
    %p114 = scmp.eq.s32.totalorder %s13, 1
    %p115 = scmp.ne.s32.totalorder %s110, %s112
    %p116 = scmp.eq.s32.totalorder %s13, 0
    %p117 = por %p115, %p116
    %p118 = scmp.ne.s32.totalorder %s110, %s112
    %p119 = scmp.eq.s32.totalorder %s18, 1
    %p120 = por %p118, %p119
    %p121 = scmp.ne.s32.totalorder %s112, %s113
    %p122 = scmp.eq.s32.totalorder %s18, 0
    %p123 = por %p121, %p122
    %p124 = scmp.ne.s32.totalorder %s112, %s113
    %p125 = scmp.eq.s32.totalorder %s19, 1
    %p126 = por %p124, %p125
    %p128 = scmp.ne.s32.totalorder %s113, %s127
    %p129 = scmp.eq.s32.totalorder %s19, 0
    %p130 = por %p128, %p129
    %s132 = sadd.s32 %s131, 1
    %p135 = scmp.eq.s32.totalorder %s13, 1
    %p136 = scmp.ne.s32.totalorder %s131, %s133
    %p137 = scmp.eq.s32.totalorder %s13, 0
    %p138 = por %p136, %p137
    %p139 = scmp.ne.s32.totalorder %s131, %s133
    %p140 = scmp.eq.s32.totalorder %s18, 1
    %p141 = por %p139, %p140
    %p142 = scmp.ne.s32.totalorder %s133, %s134
    %p143 = scmp.eq.s32.totalorder %s18, 0
    %p144 = por %p142, %p143
    %p145 = scmp.ne.s32.totalorder %s133, %s134
    %p146 = scmp.eq.s32.totalorder %s19, 1
    %p147 = por %p145, %p146
    %p149 = scmp.ne.s32.totalorder %s134, %s148
    %p150 = scmp.eq.s32.totalorder %s19, 0
    %p151 = por %p149, %p150
    %s153 = sadd.s32 %s152, 1
    %p156 = scmp.eq.s32.totalorder %s13, 1
    %p157 = scmp.ne.s32.totalorder %s152, %s154
    %p158 = scmp.eq.s32.totalorder %s13, 0
    %p159 = por %p157, %p158
    %p160 = scmp.ne.s32.totalorder %s152, %s154
    %p161 = scmp.eq.s32.totalorder %s18, 1
    %p162 = por %p160, %p161
    %p163 = scmp.ne.s32.totalorder %s154, %s155
    %p164 = scmp.eq.s32.totalorder %s18, 0
    %p165 = por %p163, %p164
    %p166 = scmp.ne.s32.totalorder %s154, %s155
    %p167 = scmp.eq.s32.totalorder %s19, 1
    %p168 = por %p166, %p167
    %p170 = scmp.ne.s32.totalorder %s155, %s169
    %p171 = scmp.eq.s32.totalorder %s19, 0
    %p172 = por %p170, %p171
    %s173 = ssub.s32 %s13, %s20
    %p174 = scmp.eq.s32.totalorder %s173, 0
    %s176 = sadd.s32 %s175, 1
    %s177 = scalar_select %p174, %s175, %s176
    %p180 = pneg %p174
    %p181 = scmp.eq.s32.totalorder %s13, 1
    %p182 = por %p180, %p181
    %p183 = scmp.ne.s32.totalorder %s175, %s178
    %p184 = scmp.eq.s32.totalorder %s13, 0
    %p185 = por %p183, %p184
    %p186 = scmp.ne.s32.totalorder %s175, %s178
    %p187 = scmp.eq.s32.totalorder %s18, 1
    %p188 = por %p186, %p187
    %p189 = scmp.ne.s32.totalorder %s178, %s179
    %p190 = scmp.eq.s32.totalorder %s18, 0
    %p191 = por %p189, %p190
    %p192 = scmp.ne.s32.totalorder %s178, %s179
    %p193 = scmp.eq.s32.totalorder %s19, 1
    %p194 = por %p192, %p193
    %p196 = scmp.ne.s32.totalorder %s179, %s195
    %p197 = scmp.eq.s32.totalorder %s19, 0
    %p198 = por %p196, %p197
    %p199 = scmp.le.s32.totalorder 1, %s13
    %p200 = scmp.lt.s32.totalorder %s13, 3
    %p201 = pnand %p199, %p200
    %p202 = pneg %p201
    // Predicated region
    $region9: #{_lambda_.8} parent=5 // pred_check
      _
    $region10: #{_lambda_.8} parent=5 // pred_check_branch
      %204 = sbr.rel (%p201) target = $region12
    $region11: #{_lambda_.8} parent=5 // pred_region
      %s205 = ssub.s32 %s13, 1
      // Predicated region
      $region13: #{_lambda_.8} parent=11 // pred_check
        %p206 = pneg %p60
      $region14: #{_lambda_.8} parent=11 // pred_check_branch
        %208 = sbr.rel (%p206) target = $region16
      $region15: #{_lambda_.8} parent=11 // pred_region
        _
      $region16: #{_lambda_.8} parent=11 // pred_fallthru
        _
      // Predicated region
      $region17: #{_lambda_.8} parent=11 // pred_check
        %p209 = pneg %p81
      $region18: #{_lambda_.8} parent=11 // pred_check_branch
        %211 = sbr.rel (%p209) target = $region20
      $region19: #{_lambda_.8} parent=11 // pred_region
        _
      $region20: #{_lambda_.8} parent=11 // pred_fallthru
        _
      // Predicated region
      $region21: #{_lambda_.8} parent=11 // pred_check
        %p212 = pneg %p102
      $region22: #{_lambda_.8} parent=11 // pred_check_branch
        %214 = sbr.rel (%p212) target = $region24
      $region23: #{_lambda_.8} parent=11 // pred_region
        _
      $region24: #{_lambda_.8} parent=11 // pred_fallthru
        _
      // Predicated region
      $region25: #{_lambda_.8} parent=11 // pred_check
        %p215 = pneg %p123
      $region26: #{_lambda_.8} parent=11 // pred_check_branch
        %217 = sbr.rel (%p215) target = $region28
      $region27: #{_lambda_.8} parent=11 // pred_region
        _
      $region28: #{_lambda_.8} parent=11 // pred_fallthru
        _
      // Predicated region
      $region29: #{_lambda_.8} parent=11 // pred_check
        %p218 = pneg %p144
      $region30: #{_lambda_.8} parent=11 // pred_check_branch
        %220 = sbr.rel (%p218) target = $region32
      $region31: #{_lambda_.8} parent=11 // pred_region
        _
      $region32: #{_lambda_.8} parent=11 // pred_fallthru
        _
      // Predicated region
      $region33: #{_lambda_.8} parent=11 // pred_check
        %p221 = pneg %p165
      $region34: #{_lambda_.8} parent=11 // pred_check_branch
        %223 = sbr.rel (%p221) target = $region36
      $region35: #{_lambda_.8} parent=11 // pred_region
        _
      $region36: #{_lambda_.8} parent=11 // pred_fallthru
        _
    $region12: #{_lambda_.8} parent=5 // pred_fallthru
      _
    %p224 = scmp.lt.s32.totalorder %s13, 2
    // Predicated region
    $region37: #{_lambda_.8} parent=5 // pred_check
      %p225 = pneg %p224
    $region38: #{_lambda_.8} parent=5 // pred_check_branch
      %227 = sbr.rel (%p225) target = $region40
    $region39: #{_lambda_.8} parent=5 // pred_region
      // Predicated region
      $region41: #{_lambda_.8} parent=39 // pred_check
        %p228 = pneg %p33
      $region42: #{_lambda_.8} parent=39 // pred_check_branch
        %230 = sbr.rel (%p228) target = $region44
      $region43: #{_lambda_.8} parent=39 // pred_region
        %s231 = smul.u32 2, %s13
        %p232 = scmp.lt.s32.totalorder %s231, 3
        %s233 = scalar_select %p232, %s231, 3
        %s234 = smul.addr %s233, 4
        %s235 = scalar_lea.vmem %s0, %s234
        %s236 = smul.u32 2, %s13
      $region44: #{_lambda_.8} parent=39 // pred_fallthru
        _
    $region40: #{_lambda_.8} parent=5 // pred_fallthru
      _
    %p237 = scmp.le.s32.totalorder 1, %s13
    %p238 = scmp.lt.s32.totalorder %s13, 3
    %p239 = pnand %p237, %p238
    %p240 = pneg %p239
    // Predicated region
    $region45: #{_lambda_.8} parent=5 // pred_check
      _
    $region46: #{_lambda_.8} parent=5 // pred_check_branch
      %242 = sbr.rel (%p239) target = $region48
    $region47: #{_lambda_.8} parent=5 // pred_region
      %s243 = ssub.s32 %s13, 1
      %s244 = smul.u32 2, %s18
      %p245 = scmp.lt.s32.totalorder %s244, 3
      %s246 = scalar_select %p245, %s244, 3
      %s247 = smul.addr %s246, 4
      %s248 = scalar_lea.vmem %s0, %s247
      %p249 = pneg %p39
      %p250 = pneg %p36
      %p251 = pneg %p60
      %p252 = pneg %p57
      %p253 = pneg %p81
      %p254 = pneg %p78
      %p255 = pneg %p102
      %p256 = pneg %p99
      %p257 = pneg %p123
      %p258 = pneg %p120
      %p259 = pneg %p144
      %p260 = pneg %p141
      %p261 = pneg %p165
      %p262 = pneg %p162
      %p263 = pneg %p191
      %p264 = pneg %p188
      %s265 = smul.u32 2, %s18
      %p266 = scmp.lt.s32.totalorder %s265, 3
      %s267 = scalar_select %p266, %s265, 3
      %s268 = smul.addr %s267, 4
      %s269 = scalar_lea.vmem %s7, %s268
      %s270 = smul.u32 2, %s18
      %p271 = scmp.lt.s32.totalorder %s270, 3
      %s272 = scalar_select %p271, %s270, 3
      %s273 = smul.addr %s272, 4
      %s274 = scalar_lea.vmem %s0, %s273
      %s275 = smul.u32 2, %s18
      %s276 = smul.u32 2, %s18
      %p277 = scmp.lt.s32.totalorder %s276, 3
      %s278 = scalar_select %p277, %s276, 3
      %s279 = smul.addr %s278, 4
      %s280 = scalar_lea.vmem %s7, %s279
      %s281 = smul.u32 2, %s18
      %v283 = vld [vmem:[%s274] sm:$0xf]
      %v284 = vld [vmem:[%s274 + $0x4] sm:$0xf]
      %v285 = vld [vmem:[%s1] sm:$0xf]
      %v286 = vld [vmem:[%s1 + $0x4] sm:$0xf]
      %v287 = vld [vmem:[%s1 + $0x8] sm:$0xf]
      %v288 = vld [vmem:[%s1 + $0xc] sm:$0xf]
      %v289 = vld [vmem:[%s2] sm:$0x1]
      %v291 = vlaneseq
      %v292 = vshrl.u32 %v291, 7
      %v293 = vsub.s32 0, %v292
      %v294 = vrot.slane %v289, %v293
      %v298 = vunpack.c.l.b16 %v283
      %v299 = vunpack.c.l.b16 %v284
      %v300 = vpack.c.b16 %v299, %v298
      %v305 = vunpack.c.l.b16 %v285
      %v306 = vunpack.c.l.b16 %v286
      %v307 = vunpack.c.l.b16 %v287
      %v308 = vunpack.c.l.b16 %v288
      %v309 = vpack.c.b16 %v306, %v305
      %v310 = vpack.c.b16 %v308, %v307
      %vm313 = vcmask 261120
      %v315 = vsel %vm313, %v300, 0
      %317 = vmatprep.subr.bf16.mxu0 0
      %318 = vmatpush1.bf16.msra.mxu0 %v309
      %319 = vmatprep.subr.bf16.mxu0 0
      %320 = vmatpush1.bf16.msra.mxu0 %v310
      %321 = vmatprep.subr.bf16.mxu0 0
      %322 = vmatpush1.bf16.msra.mxu0 0
      %323 = vmatprep.subr.bf16.mxu0 0
      %324 = vmatpush1.bf16.msra.mxu0 0
      %325 = vmatprep.subr.bf16.mxu0 0
      %326 = vmatpush1.bf16.msra.mxu0 0
      %327 = vmatprep.subr.bf16.mxu0 0
      %328 = vmatpush1.bf16.msra.mxu0 0
      %329 = vmatprep.subr.bf16.mxu0 0
      %330 = vmatpush1.bf16.msra.mxu0 0
      %331 = vmatprep.subr.bf16.mxu0 0
      %332 = vmatpush1.bf16.msra.mxu0 0
      %333 = vmatprep.subr.bf16.mxu0 0
      %334 = vmatpush1.bf16.msra.mxu0 0
      %335 = vmatprep.subr.bf16.mxu0 0
      %336 = vmatpush1.bf16.msra.mxu0 0
      %337 = vmatprep.subr.bf16.mxu0 0
      %338 = vmatpush1.bf16.msra.mxu0 0
      %339 = vmatprep.subr.bf16.mxu0 0
      %340 = vmatpush1.bf16.msra.mxu0 0
      %341 = vmatprep.subr.bf16.mxu0 0
      %342 = vmatpush1.bf16.msra.mxu0 0
      %343 = vmatprep.subr.bf16.mxu0 0
      %344 = vmatpush1.bf16.msra.mxu0 0
      %345 = vmatprep.subr.bf16.mxu0 0
      %346 = vmatpush1.bf16.msra.mxu0 0
      %347 = vmatprep.subr.bf16.mxu0 0
      %348 = vmatpush1.bf16.msra.mxu0 0
      %349 = vmatprep.mubr.bf16.mxu0 0
      %350 = vmatmul.mubr.bf16.gmra.mrb[0].mxu0 %v315
      %v351 = vpop.f32.mrb[0].mxu0
      %v352 = vadd.f32 %v294, %v351
      %v353 = vpop.f32.mrb[0].mxu0
      %v354 = vpop.f32.mrb[0].mxu0
      %v355 = vadd.f32 %v294, %v354
      %v356 = vpop.f32.mrb[0].mxu0
      %357 = vdwg.mxu0
      %v358 = vmul.f32 %v352, 0.5
      %v359 = vmul.f32 %v355, 0.5
      %v360 = vmul.f32 %v352, 0.70710677
      %v361 = vmul.f32 %v355, 0.70710677
      %vm362 = vcmp.ge.f32.partialorder %v360, 0.0
      %vm363 = vcmp.ge.f32.partialorder %v361, 0.0
      %v364 = vsel %vm362, 1.0, -1.0
      %v365 = vsel %vm363, 1.0, -1.0
      %v366 = vand.u32 2147483647, %v360
      %v367 = vand.u32 2147483647, %v361
      %v368 = vmul.f32 %v366, 0.3275911
      %v369 = vmul.f32 %v367, 0.3275911
      %v370 = vadd.f32 %v368, 1.0
      %v371 = vadd.f32 %v369, 1.0
      %v372 = vrcp.pop %v370
      %v373 = vmul.f32 1.0, %v372
      %v374 = vrcp.pop %v371
      %v375 = vmul.f32 1.0, %v374
      %v376 = vmul.f32 %v373, 1.0614054
      %v377 = vmul.f32 %v375, 1.0614054
      %v378 = vadd.f32 %v376, -1.4531521
      %v379 = vadd.f32 %v377, -1.4531521
      %v380 = vmul.f32 %v378, %v373
      %v381 = vmul.f32 %v379, %v375
      %v382 = vadd.f32 %v380, 1.4214138
      %v383 = vadd.f32 %v381, 1.4214138
      %v384 = vmul.f32 %v382, %v373
      %v385 = vmul.f32 %v383, %v375
      %v386 = vadd.f32 %v384, -0.28449672
      %v387 = vadd.f32 %v385, -0.28449672
      %v388 = vmul.f32 %v386, %v373
      %v389 = vmul.f32 %v387, %v375
      %v390 = vadd.f32 %v388, 0.2548296
      %v391 = vadd.f32 %v389, 0.2548296
      %v392 = vmul.f32 %v390, %v373
      %v393 = vmul.f32 %v391, %v375
      %v394 = vsub.f32 0.0, %v366
      %v395 = vsub.f32 0.0, %v367
      %v396 = vmul.f32 %v394, %v366
      %v397 = vmul.f32 %v395, %v367
      %v398 = vmul.f32 %v396, 1.442695
      %v399 = vpow.pop %v398
      %v400 = vmul.f32 %v397, 1.442695
      %v401 = vpow.pop %v400
      %v402 = vmul.f32 %v392, %v399
      %v403 = vmul.f32 %v393, %v401
      %v404 = vsub.f32 1.0, %v402
      %v405 = vsub.f32 1.0, %v403
      %v406 = vmul.f32 %v364, %v404
      %v407 = vmul.f32 %v365, %v405
      %v408 = vadd.f32 %v406, 1.0
      %v409 = vadd.f32 %v407, 1.0
      %v410 = vmul.f32 %v358, %v408
      %v411 = vmul.f32 %v359, %v409
      %v412 = vpack.c.bf16 %v411, %v410
      %v413 = vld [vmem:[%s3] sm:$0xf]
      %v414 = vld [vmem:[%s3 + $0x4] sm:$0xf]
      %v415 = vld [vmem:[%s3 + $0x8] sm:$0xf]
      %v416 = vld [vmem:[%s3 + $0xc] sm:$0xf]
      %v417 = vld [vmem:[%s3 + $0x10] sm:$0xf]
      %v418 = vld [vmem:[%s3 + $0x14] sm:$0xf]
      %v419 = vld [vmem:[%s3 + $0x18] sm:$0xf]
      %v420 = vld [vmem:[%s3 + $0x1c] sm:$0xf]
      %v421 = vld [vmem:[%s4] sm:$0x1]
      %v423 = vlaneseq
      %v424 = vshrl.u32 %v423, 7
      %v425 = vsub.s32 0, %v424
      %v426 = vrot.slane %v421, %v425
      %v436 = vunpack.c.l.b16 %v413
      %v437 = vunpack.c.l.b16 %v414
      %v438 = vunpack.c.l.b16 %v415
      %v439 = vunpack.c.l.b16 %v416
      %v440 = vunpack.c.l.b16 %v417
      %v441 = vunpack.c.l.b16 %v418
      %v442 = vunpack.c.l.b16 %v419
      %v443 = vunpack.c.l.b16 %v420
      %v444 = vpack.c.b16 %v437, %v436
      %v445 = vpack.c.b16 %v439, %v438
      %v446 = vpack.c.b16 %v441, %v440
      %v447 = vpack.c.b16 %v443, %v442
      %vm452 = vcmask 523264
      %v454 = vsel %vm452, %v412, 0
      %456 = vmatprep.subr.bf16.mxu0 0
      %457 = vmatpush1.bf16.msra.mxu0 %v444
      %458 = vmatprep.subr.bf16.mxu0 0
      %459 = vmatpush1.bf16.msra.mxu0 %v445
      %460 = vmatprep.subr.bf16.mxu0 0
      %461 = vmatpush1.bf16.msra.mxu0 %v446
      %462 = vmatprep.subr.bf16.mxu0 0
      %463 = vmatpush1.bf16.msra.mxu0 %v447
      %464 = vmatprep.subr.bf16.mxu0 0
      %465 = vmatpush1.bf16.msra.mxu0 0
      %466 = vmatprep.subr.bf16.mxu0 0
      %467 = vmatpush1.bf16.msra.mxu0 0
      %468 = vmatprep.subr.bf16.mxu0 0
      %469 = vmatpush1.bf16.msra.mxu0 0
      %470 = vmatprep.subr.bf16.mxu0 0
      %471 = vmatpush1.bf16.msra.mxu0 0
      %472 = vmatprep.subr.bf16.mxu0 0
      %473 = vmatpush1.bf16.msra.mxu0 0
      %474 = vmatprep.subr.bf16.mxu0 0
      %475 = vmatpush1.bf16.msra.mxu0 0
      %476 = vmatprep.subr.bf16.mxu0 0
      %477 = vmatpush1.bf16.msra.mxu0 0
      %478 = vmatprep.subr.bf16.mxu0 0
      %479 = vmatpush1.bf16.msra.mxu0 0
      %480 = vmatprep.subr.bf16.mxu0 0
      %481 = vmatpush1.bf16.msra.mxu0 0
      %482 = vmatprep.subr.bf16.mxu0 0
      %483 = vmatpush1.bf16.msra.mxu0 0
      %484 = vmatprep.subr.bf16.mxu0 0
      %485 = vmatpush1.bf16.msra.mxu0 0
      %486 = vmatprep.subr.bf16.mxu0 0
      %487 = vmatpush1.bf16.msra.mxu0 0
      %488 = vmatprep.mubr.bf16.mxu0 0
      %489 = vmatmul.mubr.bf16.gmra.mrb[0].mxu0 %v454
      %v490 = vpop.f32.mrb[0].mxu0
      %v491 = vadd.f32 %v426, %v490
      %v492 = vpop.f32.mrb[0].mxu0
      %v493 = vpop.f32.mrb[0].mxu0
      %v494 = vadd.f32 %v426, %v493
      %v495 = vpop.f32.mrb[0].mxu0
      %496 = vdwg.mxu0
      %v497 = vunpack.c.l.bf16 %v283
      %v498 = vunpack.c.l.bf16 %v284
      %v499 = vadd.f32 %v491, %v497
      %v500 = vadd.f32 %v494, %v498
      %v501 = vld [vmem:[%s5] sm:$0x1]
      %v502 = vld [vmem:[%s6] sm:$0x1]
      %v503 = vsel %vm313, %v499, 0.0
      %504 = vadd.xlane.f32.xlu0 %v503
      %v505 = vpop.xlane.xlu0 %504
      %v506 = vsel %vm313, %v500, 0.0
      %507 = vadd.xlane.f32.xlu0 %v506
      %v508 = vpop.xlane.xlu0 %507
      %v509 = vrcp.pop 32.0
      %v510 = vmul.f32 %v505, %v509
      %v511 = vmul.f32 %v508, %v509
      %v512 = vsub.f32 %v499, %v510
      %v513 = vsub.f32 %v500, %v511
      %v514 = vmul.f32 %v512, %v512
      %v515 = vmul.f32 %v513, %v513
      %v516 = vsel %vm313, %v514, 0.0
      %517 = vadd.xlane.f32.xlu0 %v516
      %v518 = vpop.xlane.xlu0 %517
      %v519 = vsel %vm313, %v515, 0.0
      %520 = vadd.xlane.f32.xlu0 %v519
      %v521 = vpop.xlane.xlu0 %520
      %v522 = vmul.f32 %v518, %v509
      %v523 = vmul.f32 %v521, %v509
      %v524 = vadd.f32 %v522, 1e-12
      %v525 = vadd.f32 %v523, 1e-12
      %v526 = vrsqrt.pop %v524
      %v527 = vrsqrt.pop %v525
      %v528 = vmul.f32 %v512, %v526
      %v529 = vmul.f32 %v513, %v527
      %v531 = vlaneseq
      %v532 = vshrl.u32 %v531, 7
      %v533 = vsub.s32 0, %v532
      %v534 = vrot.slane %v501, %v533
      %v536 = vmul.f32 %v528, %v534
      %v537 = vmul.f32 %v529, %v534
      %v539 = vlaneseq
      %v540 = vshrl.u32 %v539, 7
      %v541 = vsub.s32 0, %v540
      %v542 = vrot.slane %v502, %v541
      %v544 = vadd.f32 %v536, %v542
      %v545 = vadd.f32 %v537, %v542
      %v546 = vpack.c.bf16 %v545, %v544
      %v548 = vunpack.c.l.b16 %v546
      %v549 = vunpack.c.h.b16 %v546
      %v550 = vpack.c.b16 %v548, %v548
      %v551 = vpack.c.b16 %v549, %v549
      %vm554 = vcmask 257024
      %555 = vst.msk [vmem:[%s280] sm:$0xf] %vm554, %v550
      %556 = vst.msk [vmem:[%s280 + $0x4] sm:$0xf] %vm554, %v551
      %s557 = smul.u32 2, %s18
      %p558 = scmp.lt.s32.totalorder %s557, 3
      %s559 = scalar_select %p558, %s557, 3
      %s560 = smul.addr %s559, 4
      %s561 = scalar_lea.vmem %s7, %s560
      // Predicated region
      $region49: #{_lambda_.8} parent=47 // pred_check
        %p562 = pneg %p188
      $region50: #{_lambda_.8} parent=47 // pred_check_branch
        %564 = sbr.rel (%p562) target = $region52
      $region51: #{_lambda_.8} parent=47 // pred_region
        %s565 = smul.u32 2, %s18
      $region52: #{_lambda_.8} parent=47 // pred_fallthru
        _
    $region48: #{_lambda_.8} parent=5 // pred_fallthru
      _
    %p566 = scmp.le.s32.totalorder 2, %s13
    // Predicated region
    $region53: #{_lambda_.8} parent=5 // pred_check
      %p567 = pneg %p566
    $region54: #{_lambda_.8} parent=5 // pred_check_branch
      %569 = sbr.rel (%p567) target = $region56
    $region55: #{_lambda_.8} parent=5 // pred_region
      %s570 = ssub.s32 %s13, 2
      // Predicated region
      $region57: #{_lambda_.8} parent=55 // pred_check
        %p571 = pneg %p194
      $region58: #{_lambda_.8} parent=55 // pred_check_branch
        %573 = sbr.rel (%p571) target = $region60
      $region59: #{_lambda_.8} parent=55 // pred_region
        %s574 = smul.u32 2, %s19
        %p575 = scmp.lt.s32.totalorder %s574, 3
        %s576 = scalar_select %p575, %s574, 3
        %s577 = smul.addr %s576, 4
        %s578 = scalar_lea.vmem %s7, %s577
      $region60: #{_lambda_.8} parent=55 // pred_fallthru
        _
    $region56: #{_lambda_.8} parent=5 // pred_fallthru
      _
  $region6: #{_lambda_.8} parent=0 // loop_footer
    %s17 = sadd.s32 1, %s13
  $region7: #{_lambda_.8} parent=0 // loop_footer_branch
    %12 = sbr.rel target = $region3
  $region8: #{_lambda_.8} parent=0 // loop_exit
    _

// kernel: _lambda_.7
$region0: #{_lambda_.7}
  #allocation0 [shape = 'u32[]', space=smem, size = 0x4, offset = 0x4, fixed_abs, tag = 'smem constant byte address 0x4 - core index']
  #allocation1 [shape = 'u32[144,128]{1,0:T(1,128)}', space=vmem, size = 0x12000, scoped, tag = 'internal scratch']
  %s0 = inlined_call_operand.vmem [shape: bf16[2,16,32], index: 0, kind: input, shape index: {}]
  %s1 = inlined_call_operand.vmem [shape: bf16[32,96], index: 1, kind: input, shape index: {}]
  %s2 = inlined_call_operand.vmem [shape: f32[1,96], index: 2, kind: input, shape index: {}]
  %s3 = inlined_call_operand.vmem [shape: bf16[32,32], index: 3, kind: input, shape index: {}]
  %s4 = inlined_call_operand.vmem [shape: f32[1,32], index: 4, kind: input, shape index: {}]
  %s5 = inlined_call_operand.vmem [shape: f32[1,32], index: 5, kind: input, shape index: {}]
  %s6 = inlined_call_operand.vmem [shape: f32[1,32], index: 6, kind: input, shape index: {}]
  %s7 = inlined_call_operand.vmem [shape: f32[2,1,16], index: 7, kind: input, shape index: {}]
  %s8 = inlined_call_operand.vmem [shape: bf16[2,16,32], index: 8, kind: output, shape index: {}]
  %s9 = sld [smem:[#allocation0]]
  $region65: #{_lambda_.7} parent=0
    _
  %s11 = ssub.s32 1, %s9
  %s12 = scalar_select 0, %s11, %s9
  loop: start=0, step=1, limit=4
  $region2: #{_lambda_.7} parent=0 // loop_pre_header
    _
  $region3: #{_lambda_.7} parent=0 // loop_header
    %s14 = sphi 0, %s18
    %p15 = scmp.ge.s32.totalorder %s14, 4
    %s24 = sphi 0, %s26
    %s27 = sphi 0, %s24
    %s28 = sphi 0, %s27
    %s44 = sphi 0, %s28
    %s48 = sphi 0, %s48
    %s50 = sphi 0, %s48
    %s51 = sphi 0, %s50
    %s65 = sphi 0, %s51
    %s69 = sphi 0, %s69
    %s71 = sphi 0, %s69
    %s72 = sphi 0, %s71
    %s86 = sphi 0, %s72
    %s90 = sphi 0, %s90
    %s92 = sphi 0, %s90
    %s93 = sphi 0, %s92
    %s107 = sphi 0, %s93
    %s111 = sphi 0, %s111
    %s113 = sphi 0, %s111
    %s114 = sphi 0, %s113
    %s128 = sphi 0, %s114
    %s132 = sphi 0, %s132
    %s134 = sphi 0, %s132
    %s135 = sphi 0, %s134
    %s149 = sphi 0, %s135
    %s153 = sphi 0, %s153
    %s155 = sphi 0, %s153
    %s156 = sphi 0, %s155
    %s170 = sphi 0, %s156
    %s176 = sphi 0, %s178
    %s179 = sphi 0, %s176
    %s180 = sphi 0, %s179
    %s196 = sphi 0, %s180
    %s202 = sphi 0, %s204
    %s205 = sphi 0, %s202
    %s206 = sphi 0, %s205
    %s222 = sphi 0, %s206
  $region4: #{_lambda_.7} parent=0 // loop_header_branch
    %17 = sbr.rel (%p15) target = $region8
  $region5: #{_lambda_.7} parent=0 // loop_body
    %s19 = ssub.s32 %s14, 1
    %s20 = ssub.s32 %s14, 2
    %s21 = sadd.s32 %s14, 1
    %s22 = ssub.s32 %s14, %s21
    %p23 = scmp.eq.s32.totalorder %s22, 0
    %s25 = sadd.s32 %s24, 1
    %s26 = scalar_select %p23, %s24, %s25
    %p29 = pneg %p23
    %p30 = scmp.eq.s32.totalorder %s14, 1
    %p31 = por %p29, %p30
    %p32 = scmp.ne.s32.totalorder %s24, %s27
    %p33 = scmp.eq.s32.totalorder %s14, 0
    %p34 = por %p32, %p33
    %p35 = scmp.ne.s32.totalorder %s24, %s27
    %p36 = scmp.eq.s32.totalorder %s19, 1
    %p37 = por %p35, %p36
    %p38 = scmp.ne.s32.totalorder %s27, %s28
    %p39 = scmp.eq.s32.totalorder %s19, 0
    %p40 = por %p38, %p39
    %p41 = scmp.ne.s32.totalorder %s27, %s28
    %p42 = scmp.eq.s32.totalorder %s20, 1
    %p43 = por %p41, %p42
    %p45 = scmp.ne.s32.totalorder %s28, %s44
    %p46 = scmp.eq.s32.totalorder %s20, 0
    %p47 = por %p45, %p46
    %s49 = sadd.s32 %s48, 1
    %p52 = scmp.eq.s32.totalorder %s14, 1
    %p53 = scmp.ne.s32.totalorder %s48, %s50
    %p54 = scmp.eq.s32.totalorder %s14, 0
    %p55 = por %p53, %p54
    %p56 = scmp.ne.s32.totalorder %s48, %s50
    %p57 = scmp.eq.s32.totalorder %s19, 1
    %p58 = por %p56, %p57
    %p59 = scmp.ne.s32.totalorder %s50, %s51
    %p60 = scmp.eq.s32.totalorder %s19, 0
    %p61 = por %p59, %p60
    %p62 = scmp.ne.s32.totalorder %s50, %s51
    %p63 = scmp.eq.s32.totalorder %s20, 1
    %p64 = por %p62, %p63
    %p66 = scmp.ne.s32.totalorder %s51, %s65
    %p67 = scmp.eq.s32.totalorder %s20, 0
    %p68 = por %p66, %p67
    %s70 = sadd.s32 %s69, 1
    %p73 = scmp.eq.s32.totalorder %s14, 1
    %p74 = scmp.ne.s32.totalorder %s69, %s71
    %p75 = scmp.eq.s32.totalorder %s14, 0
    %p76 = por %p74, %p75
    %p77 = scmp.ne.s32.totalorder %s69, %s71
    %p78 = scmp.eq.s32.totalorder %s19, 1
    %p79 = por %p77, %p78
    %p80 = scmp.ne.s32.totalorder %s71, %s72
    %p81 = scmp.eq.s32.totalorder %s19, 0
    %p82 = por %p80, %p81
    %p83 = scmp.ne.s32.totalorder %s71, %s72
    %p84 = scmp.eq.s32.totalorder %s20, 1
    %p85 = por %p83, %p84
    %p87 = scmp.ne.s32.totalorder %s72, %s86
    %p88 = scmp.eq.s32.totalorder %s20, 0
    %p89 = por %p87, %p88
    %s91 = sadd.s32 %s90, 1
    %p94 = scmp.eq.s32.totalorder %s14, 1
    %p95 = scmp.ne.s32.totalorder %s90, %s92
    %p96 = scmp.eq.s32.totalorder %s14, 0
    %p97 = por %p95, %p96
    %p98 = scmp.ne.s32.totalorder %s90, %s92
    %p99 = scmp.eq.s32.totalorder %s19, 1
    %p100 = por %p98, %p99
    %p101 = scmp.ne.s32.totalorder %s92, %s93
    %p102 = scmp.eq.s32.totalorder %s19, 0
    %p103 = por %p101, %p102
    %p104 = scmp.ne.s32.totalorder %s92, %s93
    %p105 = scmp.eq.s32.totalorder %s20, 1
    %p106 = por %p104, %p105
    %p108 = scmp.ne.s32.totalorder %s93, %s107
    %p109 = scmp.eq.s32.totalorder %s20, 0
    %p110 = por %p108, %p109
    %s112 = sadd.s32 %s111, 1
    %p115 = scmp.eq.s32.totalorder %s14, 1
    %p116 = scmp.ne.s32.totalorder %s111, %s113
    %p117 = scmp.eq.s32.totalorder %s14, 0
    %p118 = por %p116, %p117
    %p119 = scmp.ne.s32.totalorder %s111, %s113
    %p120 = scmp.eq.s32.totalorder %s19, 1
    %p121 = por %p119, %p120
    %p122 = scmp.ne.s32.totalorder %s113, %s114
    %p123 = scmp.eq.s32.totalorder %s19, 0
    %p124 = por %p122, %p123
    %p125 = scmp.ne.s32.totalorder %s113, %s114
    %p126 = scmp.eq.s32.totalorder %s20, 1
    %p127 = por %p125, %p126
    %p129 = scmp.ne.s32.totalorder %s114, %s128
    %p130 = scmp.eq.s32.totalorder %s20, 0
    %p131 = por %p129, %p130
    %s133 = sadd.s32 %s132, 1
    %p136 = scmp.eq.s32.totalorder %s14, 1
    %p137 = scmp.ne.s32.totalorder %s132, %s134
    %p138 = scmp.eq.s32.totalorder %s14, 0
    %p139 = por %p137, %p138
    %p140 = scmp.ne.s32.totalorder %s132, %s134
    %p141 = scmp.eq.s32.totalorder %s19, 1
    %p142 = por %p140, %p141
    %p143 = scmp.ne.s32.totalorder %s134, %s135
    %p144 = scmp.eq.s32.totalorder %s19, 0
    %p145 = por %p143, %p144
    %p146 = scmp.ne.s32.totalorder %s134, %s135
    %p147 = scmp.eq.s32.totalorder %s20, 1
    %p148 = por %p146, %p147
    %p150 = scmp.ne.s32.totalorder %s135, %s149
    %p151 = scmp.eq.s32.totalorder %s20, 0
    %p152 = por %p150, %p151
    %s154 = sadd.s32 %s153, 1
    %p157 = scmp.eq.s32.totalorder %s14, 1
    %p158 = scmp.ne.s32.totalorder %s153, %s155
    %p159 = scmp.eq.s32.totalorder %s14, 0
    %p160 = por %p158, %p159
    %p161 = scmp.ne.s32.totalorder %s153, %s155
    %p162 = scmp.eq.s32.totalorder %s19, 1
    %p163 = por %p161, %p162
    %p164 = scmp.ne.s32.totalorder %s155, %s156
    %p165 = scmp.eq.s32.totalorder %s19, 0
    %p166 = por %p164, %p165
    %p167 = scmp.ne.s32.totalorder %s155, %s156
    %p168 = scmp.eq.s32.totalorder %s20, 1
    %p169 = por %p167, %p168
    %p171 = scmp.ne.s32.totalorder %s156, %s170
    %p172 = scmp.eq.s32.totalorder %s20, 0
    %p173 = por %p171, %p172
    %s174 = ssub.s32 %s14, %s21
    %p175 = scmp.eq.s32.totalorder %s174, 0
    %s177 = sadd.s32 %s176, 1
    %s178 = scalar_select %p175, %s176, %s177
    %p181 = pneg %p175
    %p182 = scmp.eq.s32.totalorder %s14, 1
    %p183 = por %p181, %p182
    %p184 = scmp.ne.s32.totalorder %s176, %s179
    %p185 = scmp.eq.s32.totalorder %s14, 0
    %p186 = por %p184, %p185
    %p187 = scmp.ne.s32.totalorder %s176, %s179
    %p188 = scmp.eq.s32.totalorder %s19, 1
    %p189 = por %p187, %p188
    %p190 = scmp.ne.s32.totalorder %s179, %s180
    %p191 = scmp.eq.s32.totalorder %s19, 0
    %p192 = por %p190, %p191
    %p193 = scmp.ne.s32.totalorder %s179, %s180
    %p194 = scmp.eq.s32.totalorder %s20, 1
    %p195 = por %p193, %p194
    %p197 = scmp.ne.s32.totalorder %s180, %s196
    %p198 = scmp.eq.s32.totalorder %s20, 0
    %p199 = por %p197, %p198
    %s200 = ssub.s32 %s14, %s21
    %p201 = scmp.eq.s32.totalorder %s200, 0
    %s203 = sadd.s32 %s202, 1
    %s204 = scalar_select %p201, %s202, %s203
    %p207 = pneg %p201
    %p208 = scmp.eq.s32.totalorder %s14, 1
    %p209 = por %p207, %p208
    %p210 = scmp.ne.s32.totalorder %s202, %s205
    %p211 = scmp.eq.s32.totalorder %s14, 0
    %p212 = por %p210, %p211
    %p213 = scmp.ne.s32.totalorder %s202, %s205
    %p214 = scmp.eq.s32.totalorder %s19, 1
    %p215 = por %p213, %p214
    %p216 = scmp.ne.s32.totalorder %s205, %s206
    %p217 = scmp.eq.s32.totalorder %s19, 0
    %p218 = por %p216, %p217
    %p219 = scmp.ne.s32.totalorder %s205, %s206
    %p220 = scmp.eq.s32.totalorder %s20, 1
    %p221 = por %p219, %p220
    %p223 = scmp.ne.s32.totalorder %s206, %s222
    %p224 = scmp.eq.s32.totalorder %s20, 0
    %p225 = por %p223, %p224
    %p226 = scmp.le.s32.totalorder 1, %s14
    %p227 = scmp.lt.s32.totalorder %s14, 3
    %p228 = pnand %p226, %p227
    %p229 = pneg %p228
    // Predicated region
    $region9: #{_lambda_.7} parent=5 // pred_check
      _
    $region10: #{_lambda_.7} parent=5 // pred_check_branch
      %231 = sbr.rel (%p228) target = $region12
    $region11: #{_lambda_.7} parent=5 // pred_region
      %s232 = ssub.s32 %s14, 1
      // Predicated region
      $region13: #{_lambda_.7} parent=11 // pred_check
        %p233 = pneg %p61
      $region14: #{_lambda_.7} parent=11 // pred_check_branch
        %235 = sbr.rel (%p233) target = $region16
      $region15: #{_lambda_.7} parent=11 // pred_region
        _
      $region16: #{_lambda_.7} parent=11 // pred_fallthru
        _
      // Predicated region
      $region17: #{_lambda_.7} parent=11 // pred_check
        %p236 = pneg %p82
      $region18: #{_lambda_.7} parent=11 // pred_check_branch
        %238 = sbr.rel (%p236) target = $region20
      $region19: #{_lambda_.7} parent=11 // pred_region
        _
      $region20: #{_lambda_.7} parent=11 // pred_fallthru
        _
      // Predicated region
      $region21: #{_lambda_.7} parent=11 // pred_check
        %p239 = pneg %p103
      $region22: #{_lambda_.7} parent=11 // pred_check_branch
        %241 = sbr.rel (%p239) target = $region24
      $region23: #{_lambda_.7} parent=11 // pred_region
        _
      $region24: #{_lambda_.7} parent=11 // pred_fallthru
        _
      // Predicated region
      $region25: #{_lambda_.7} parent=11 // pred_check
        %p242 = pneg %p124
      $region26: #{_lambda_.7} parent=11 // pred_check_branch
        %244 = sbr.rel (%p242) target = $region28
      $region27: #{_lambda_.7} parent=11 // pred_region
        _
      $region28: #{_lambda_.7} parent=11 // pred_fallthru
        _
      // Predicated region
      $region29: #{_lambda_.7} parent=11 // pred_check
        %p245 = pneg %p145
      $region30: #{_lambda_.7} parent=11 // pred_check_branch
        %247 = sbr.rel (%p245) target = $region32
      $region31: #{_lambda_.7} parent=11 // pred_region
        _
      $region32: #{_lambda_.7} parent=11 // pred_fallthru
        _
      // Predicated region
      $region33: #{_lambda_.7} parent=11 // pred_check
        %p248 = pneg %p166
      $region34: #{_lambda_.7} parent=11 // pred_check_branch
        %250 = sbr.rel (%p248) target = $region36
      $region35: #{_lambda_.7} parent=11 // pred_region
        _
      $region36: #{_lambda_.7} parent=11 // pred_fallthru
        _
    $region12: #{_lambda_.7} parent=5 // pred_fallthru
      _
    %p251 = scmp.lt.s32.totalorder %s14, 2
    // Predicated region
    $region37: #{_lambda_.7} parent=5 // pred_check
      %p252 = pneg %p251
    $region38: #{_lambda_.7} parent=5 // pred_check_branch
      %254 = sbr.rel (%p252) target = $region40
    $region39: #{_lambda_.7} parent=5 // pred_region
      // Predicated region
      $region41: #{_lambda_.7} parent=39 // pred_check
        %p255 = pneg %p34
      $region42: #{_lambda_.7} parent=39 // pred_check_branch
        %257 = sbr.rel (%p255) target = $region44
      $region43: #{_lambda_.7} parent=39 // pred_region
        %p258 = scmp.lt.s32.totalorder %s14, 1
        %s259 = scalar_select %p258, %s14, 1
        %s260 = smul.addr %s259, 2
        %s261 = smul.addr %s260, 4
        %s262 = scalar_lea.vmem %s0, %s261
      $region44: #{_lambda_.7} parent=39 // pred_fallthru
        _
      // Predicated region
      $region45: #{_lambda_.7} parent=39 // pred_check
        %p263 = pneg %p186
      $region46: #{_lambda_.7} parent=39 // pred_check_branch
        %265 = sbr.rel (%p263) target = $region48
      $region47: #{_lambda_.7} parent=39 // pred_region
        %p266 = scmp.lt.s32.totalorder %s14, 1
        %s267 = scalar_select %p266, %s14, 1
        %s268 = scalar_lea.vmem %s7, %s267
      $region48: #{_lambda_.7} parent=39 // pred_fallthru
        _
    $region40: #{_lambda_.7} parent=5 // pred_fallthru
      _
    %p269 = scmp.le.s32.totalorder 1, %s14
    %p270 = scmp.lt.s32.totalorder %s14, 3
    %p271 = pnand %p269, %p270
    %p272 = pneg %p271
    // Predicated region
    $region49: #{_lambda_.7} parent=5 // pred_check
      _
    $region50: #{_lambda_.7} parent=5 // pred_check_branch
      %274 = sbr.rel (%p271) target = $region52
    $region51: #{_lambda_.7} parent=5 // pred_region
      %s275 = ssub.s32 %s14, 1
      %p276 = scmp.lt.s32.totalorder %s19, 1
      %s277 = scalar_select %p276, %s19, 1
      %s278 = smul.addr %s277, 2
      %s279 = smul.addr %s278, 4
      %s280 = scalar_lea.vmem %s0, %s279
      %p281 = pneg %p40
      %p282 = pneg %p37
      %p283 = pneg %p61
      %p284 = pneg %p58
      %p285 = pneg %p82
      %p286 = pneg %p79
      %p287 = pneg %p103
      %p288 = pneg %p100
      %p289 = pneg %p124
      %p290 = pneg %p121
      %p291 = pneg %p145
      %p292 = pneg %p142
      %p293 = pneg %p166
      %p294 = pneg %p163
      %p295 = scmp.lt.s32.totalorder %s19, 1
      %s296 = scalar_select %p295, %s19, 1
      %s297 = scalar_lea.vmem %s7, %s296
      %p298 = pneg %p192
      %p299 = pneg %p189
      %p300 = pneg %p218
      %p301 = pneg %p215
      %p302 = scmp.lt.s32.totalorder %s19, 1
      %s303 = scalar_select %p302, %s19, 1
      %s304 = smul.addr %s303, 2
      %s305 = smul.addr %s304, 4
      %s306 = scalar_lea.vmem %s8, %s305
      %p307 = scmp.lt.s32.totalorder %s19, 1
      %s308 = scalar_select %p307, %s19, 1
      %s309 = smul.addr %s308, 2
      %s310 = smul.addr %s309, 4
      %s311 = scalar_lea.vmem %s0, %s310
      %p312 = scmp.lt.s32.totalorder %s19, 1
      %s313 = scalar_select %p312, %s19, 1
      %s314 = scalar_lea.vmem %s7, %s313
      %p315 = scmp.lt.s32.totalorder %s19, 1
      %s316 = scalar_select %p315, %s19, 1
      %s317 = smul.addr %s316, 2
      %s318 = smul.addr %s317, 4
      %s319 = scalar_lea.vmem %s8, %s318
      %v321 = vld [vmem:[%s311] sm:$0xf]
      %v322 = vld [vmem:[%s311 + $0x4] sm:$0xf]
      %v323 = vunpack.c.l.bf16 %v321
      %v324 = vunpack.c.l.bf16 %v322
      %v325 = vld [vmem:[%s1] sm:$0xf]
      %v326 = vld [vmem:[%s1 + $0x4] sm:$0xf]
      %v327 = vld [vmem:[%s1 + $0x8] sm:$0xf]
      %v328 = vld [vmem:[%s1 + $0xc] sm:$0xf]
      %v329 = vld [vmem:[%s2] sm:$0x1]
      %v331 = vlaneseq
      %v332 = vshrl.u32 %v331, 7
      %v333 = vsub.s32 0, %v332
      %v334 = vrot.slane %v329, %v333
      %v338 = vunpack.c.l.b16 %v321
      %v339 = vunpack.c.l.b16 %v322
      %v340 = vpack.c.b16 %v339, %v338
      %v345 = vunpack.c.l.b16 %v325
      %v346 = vunpack.c.l.b16 %v326
      %v347 = vunpack.c.l.b16 %v327
      %v348 = vunpack.c.l.b16 %v328
      %v349 = vpack.c.b16 %v346, %v345
      %v350 = vpack.c.b16 %v348, %v347
      %vm353 = vcmask 261120
      %v355 = vsel %vm353, %v340, 0
      %357 = vmatprep.subr.bf16.mxu0 0
      %358 = vmatpush1.bf16.msra.mxu0 %v349
      %359 = vmatprep.subr.bf16.mxu0 0
      %360 = vmatpush1.bf16.msra.mxu0 %v350
      %361 = vmatprep.subr.bf16.mxu0 0
      %362 = vmatpush1.bf16.msra.mxu0 0
      %363 = vmatprep.subr.bf16.mxu0 0
      %364 = vmatpush1.bf16.msra.mxu0 0
      %365 = vmatprep.subr.bf16.mxu0 0
      %366 = vmatpush1.bf16.msra.mxu0 0
      %367 = vmatprep.subr.bf16.mxu0 0
      %368 = vmatpush1.bf16.msra.mxu0 0
      %369 = vmatprep.subr.bf16.mxu0 0
      %370 = vmatpush1.bf16.msra.mxu0 0
      %371 = vmatprep.subr.bf16.mxu0 0
      %372 = vmatpush1.bf16.msra.mxu0 0
      %373 = vmatprep.subr.bf16.mxu0 0
      %374 = vmatpush1.bf16.msra.mxu0 0
      %375 = vmatprep.subr.bf16.mxu0 0
      %376 = vmatpush1.bf16.msra.mxu0 0
      %377 = vmatprep.subr.bf16.mxu0 0
      %378 = vmatpush1.bf16.msra.mxu0 0
      %379 = vmatprep.subr.bf16.mxu0 0
      %380 = vmatpush1.bf16.msra.mxu0 0
      %381 = vmatprep.subr.bf16.mxu0 0
      %382 = vmatpush1.bf16.msra.mxu0 0
      %383 = vmatprep.subr.bf16.mxu0 0
      %384 = vmatpush1.bf16.msra.mxu0 0
      %385 = vmatprep.subr.bf16.mxu0 0
      %386 = vmatpush1.bf16.msra.mxu0 0
      %387 = vmatprep.subr.bf16.mxu0 0
      %388 = vmatpush1.bf16.msra.mxu0 0
      %389 = vmatprep.mubr.bf16.mxu0 0
      %390 = vmatmul.mubr.bf16.gmra.mrb[0].mxu0 %v355
      %v391 = vpop.f32.mrb[0].mxu0
      %v392 = vadd.f32 %v334, %v391
      %v393 = vpop.f32.mrb[0].mxu0
      %v394 = vpop.f32.mrb[0].mxu0
      %v395 = vadd.f32 %v334, %v394
      %v396 = vpop.f32.mrb[0].mxu0
      %397 = vdwg.mxu0
      %v398 = vld [vmem:[%s3] sm:$0xf]
      %v399 = vld [vmem:[%s3 + $0x4] sm:$0xf]
      %v400 = vld [vmem:[%s3 + $0x8] sm:$0xf]
      %v401 = vld [vmem:[%s3 + $0xc] sm:$0xf]
      %v402 = vld [vmem:[%s314] sm:$0x1]
      %v403 = vpack.c.bf16 %v395, %v392
      %405 = vrot.lane.b32.xlu0 %v403, 96
      %v406 = vpop.permute.xlu0 %405
      %vm407 = vcmask 64512
      %v409 = vsel %vm407, %v403, 0
      %v412 = vsel %vm407, %v406, 0
      %414 = vmatprep.subr.bf16.mxu0 0
      %415 = vmatpush1.bf16.xpose.msra.mxu0 %v412
      %416 = vmatprep.subr.bf16.mxu0 0
      %417 = vmatpush1.bf16.xpose.msra.mxu0 0
      %418 = vmatprep.subr.bf16.mxu0 0
      %419 = vmatpush1.bf16.xpose.msra.mxu0 0
      %420 = vmatprep.subr.bf16.mxu0 0
      %421 = vmatpush1.bf16.xpose.msra.mxu0 0
      %422 = vmatprep.subr.bf16.mxu0 0
      %423 = vmatpush1.bf16.xpose.msra.mxu0 0
      %424 = vmatprep.subr.bf16.mxu0 0
      %425 = vmatpush1.bf16.xpose.msra.mxu0 0
      %426 = vmatprep.subr.bf16.mxu0 0
      %427 = vmatpush1.bf16.xpose.msra.mxu0 0
      %428 = vmatprep.subr.bf16.mxu0 0
      %429 = vmatpush1.bf16.xpose.msra.mxu0 0
      %430 = vmatprep.subr.bf16.mxu0 0
      %431 = vmatpush1.bf16.xpose.msra.mxu0 0
      %432 = vmatprep.subr.bf16.mxu0 0
      %433 = vmatpush1.bf16.xpose.msra.mxu0 0
      %434 = vmatprep.subr.bf16.mxu0 0
      %435 = vmatpush1.bf16.xpose.msra.mxu0 0
      %436 = vmatprep.subr.bf16.mxu0 0
      %437 = vmatpush1.bf16.xpose.msra.mxu0 0
      %438 = vmatprep.subr.bf16.mxu0 0
      %439 = vmatpush1.bf16.xpose.msra.mxu0 0
      %440 = vmatprep.subr.bf16.mxu0 0
      %441 = vmatpush1.bf16.xpose.msra.mxu0 0
      %442 = vmatprep.subr.bf16.mxu0 0
      %443 = vmatpush1.bf16.xpose.msra.mxu0 0
      %444 = vmatprep.subr.bf16.mxu0 0
      %445 = vmatpush1.bf16.xpose.msra.mxu0 0
      %446 = vmatprep.mubr.bf16.mxu0 0
      %447 = vmatmul.mubr.bf16.gmra.mrb[0].mxu0 %v409
      %v448 = vpop.f32.mrb[0].mxu0
      %v449 = vadd.f32 0.0, %v448
      %v450 = vpop.f32.mrb[0].mxu0
      %v451 = vpop.f32.mrb[0].mxu0
      %v452 = vadd.f32 0.0, %v451
      %v453 = vpop.f32.mrb[0].mxu0
      %454 = vdwg.mxu0
      %v455 = vmul.f32 %v449, 0.35355338
      %v456 = vmul.f32 %v452, 0.35355338
      %v458 = vlaneseq
      %v459 = vshrl.u32 %v458, 7
      %v460 = vsub.s32 0, %v459
      %v461 = vrot.slane %v402, %v460
      %v463 = vadd.f32 %v455, %v461
      %v464 = vadd.f32 %v456, %v461
      %vm465 = vcmask 130048
      %v466 = vsel %vm465, %v463, -inf
      %467 = vmax.xlane.f32.xlu0 %v466
      %v468 = vpop.xlane.xlu0 %467
      %v469 = vsel %vm465, %v464, -inf
      %470 = vmax.xlane.f32.xlu0 %v469
      %v471 = vpop.xlane.xlu0 %470
      %v472 = vsub.f32 %v463, %v468
      %v473 = vsub.f32 %v464, %v471
      %v474 = vmul.f32 %v472, 1.442695
      %v475 = vpow.pop %v474
      %v476 = vmul.f32 %v473, 1.442695
      %v477 = vpow.pop %v476
      %v478 = vsel %vm465, %v475, 0.0
      %479 = vadd.xlane.f32.xlu0 %v478
      %v480 = vpop.xlane.xlu0 %479
      %v481 = vsel %vm465, %v477, 0.0
      %482 = vadd.xlane.f32.xlu0 %v481
      %v483 = vpop.xlane.xlu0 %482
      %v484 = vrcp.pop %v480
      %v485 = vrcp.pop %v483
      %v486 = vmul.f32 %v475, %v484
      %v487 = vmul.f32 %v477, %v485
      %v488 = vpack.c.bf16 %v487, %v486
      %489 = vrot.lane.b32.xlu0 %v403, 64
      %v490 = vpop.permute.xlu0 %489
      %v493 = vsel %vm465, %v488, 0
      %495 = vmatprep.subr.bf16.mxu0 0
      %496 = vmatpush1.bf16.msra.mxu0 %v490
      %497 = vmatprep.subr.bf16.mxu0 0
      %498 = vmatpush1.bf16.msra.mxu0 0
      %499 = vmatprep.subr.bf16.mxu0 0
      %500 = vmatpush1.bf16.msra.mxu0 0
      %501 = vmatprep.subr.bf16.mxu0 0
      %502 = vmatpush1.bf16.msra.mxu0 0
      %503 = vmatprep.subr.bf16.mxu0 0
      %504 = vmatpush1.bf16.msra.mxu0 0
      %505 = vmatprep.subr.bf16.mxu0 0
      %506 = vmatpush1.bf16.msra.mxu0 0
      %507 = vmatprep.subr.bf16.mxu0 0
      %508 = vmatpush1.bf16.msra.mxu0 0
      %509 = vmatprep.subr.bf16.mxu0 0
      %510 = vmatpush1.bf16.msra.mxu0 0
      %511 = vmatprep.subr.bf16.mxu0 0
      %512 = vmatpush1.bf16.msra.mxu0 0
      %513 = vmatprep.subr.bf16.mxu0 0
      %514 = vmatpush1.bf16.msra.mxu0 0
      %515 = vmatprep.subr.bf16.mxu0 0
      %516 = vmatpush1.bf16.msra.mxu0 0
      %517 = vmatprep.subr.bf16.mxu0 0
      %518 = vmatpush1.bf16.msra.mxu0 0
      %519 = vmatprep.subr.bf16.mxu0 0
      %520 = vmatpush1.bf16.msra.mxu0 0
      %521 = vmatprep.subr.bf16.mxu0 0
      %522 = vmatpush1.bf16.msra.mxu0 0
      %523 = vmatprep.subr.bf16.mxu0 0
      %524 = vmatpush1.bf16.msra.mxu0 0
      %525 = vmatprep.subr.bf16.mxu0 0
      %526 = vmatpush1.bf16.msra.mxu0 0
      %527 = vmatprep.mubr.bf16.mxu0 0
      %528 = vmatmul.mubr.bf16.gmra.mrb[0].mxu0 %v493
      %v529 = vpop.f32.mrb[0].mxu0
      %v530 = vadd.f32 0.0, %v529
      %v531 = vpop.f32.mrb[0].mxu0
      %v532 = vpop.f32.mrb[0].mxu0
      %v533 = vadd.f32 0.0, %v532
      %v534 = vpop.f32.mrb[0].mxu0
      %535 = vdwg.mxu0
      %v536 = vpack.c.bf16 %v533, %v530
      %537 = vrot.lane.b32.xlu0 %v403, 120
      %v538 = vpop.permute.xlu0 %537
      %539 = vrot.lane.b32.xlu0 %v403, 88
      %v540 = vpop.permute.xlu0 %539
      %v542 = vsel %vm407, %v538, 0
      %v545 = vsel %vm407, %v540, 0
      %547 = vmatprep.subr.bf16.mxu0 0
      %548 = vmatpush1.bf16.xpose.msra.mxu0 %v545
      %549 = vmatprep.subr.bf16.mxu0 0
      %550 = vmatpush1.bf16.xpose.msra.mxu0 0
      %551 = vmatprep.subr.bf16.mxu0 0
      %552 = vmatpush1.bf16.xpose.msra.mxu0 0
      %553 = vmatprep.subr.bf16.mxu0 0
      %554 = vmatpush1.bf16.xpose.msra.mxu0 0
      %555 = vmatprep.subr.bf16.mxu0 0
      %556 = vmatpush1.bf16.xpose.msra.mxu0 0
      %557 = vmatprep.subr.bf16.mxu0 0
      %558 = vmatpush1.bf16.xpose.msra.mxu0 0
      %559 = vmatprep.subr.bf16.mxu0 0
      %560 = vmatpush1.bf16.xpose.msra.mxu0 0
      %561 = vmatprep.subr.bf16.mxu0 0
      %562 = vmatpush1.bf16.xpose.msra.mxu0 0
      %563 = vmatprep.subr.bf16.mxu0 0
      %564 = vmatpush1.bf16.xpose.msra.mxu0 0
      %565 = vmatprep.subr.bf16.mxu0 0
      %566 = vmatpush1.bf16.xpose.msra.mxu0 0
      %567 = vmatprep.subr.bf16.mxu0 0
      %568 = vmatpush1.bf16.xpose.msra.mxu0 0
      %569 = vmatprep.subr.bf16.mxu0 0
      %570 = vmatpush1.bf16.xpose.msra.mxu0 0
      %571 = vmatprep.subr.bf16.mxu0 0
      %572 = vmatpush1.bf16.xpose.msra.mxu0 0
      %573 = vmatprep.subr.bf16.mxu0 0
      %574 = vmatpush1.bf16.xpose.msra.mxu0 0
      %575 = vmatprep.subr.bf16.mxu0 0
      %576 = vmatpush1.bf16.xpose.msra.mxu0 0
      %577 = vmatprep.subr.bf16.mxu0 0
      %578 = vmatpush1.bf16.xpose.msra.mxu0 0
      %579 = vmatprep.mubr.bf16.mxu0 0
      %580 = vmatmul.mubr.bf16.gmra.mrb[0].mxu0 %v542
      %v581 = vpop.f32.mrb[0].mxu0
      %v582 = vadd.f32 0.0, %v581
      %v583 = vpop.f32.mrb[0].mxu0
      %v584 = vpop.f32.mrb[0].mxu0
      %v585 = vadd.f32 0.0, %v584
      %v586 = vpop.f32.mrb[0].mxu0
      %587 = vdwg.mxu0
      %v588 = vmul.f32 %v582, 0.35355338
      %v589 = vmul.f32 %v585, 0.35355338
      %v590 = vadd.f32 %v588, %v461
      %v591 = vadd.f32 %v589, %v461
      %v592 = vsel %vm465, %v590, -inf
      %593 = vmax.xlane.f32.xlu0 %v592
      %v594 = vpop.xlane.xlu0 %593
      %v595 = vsel %vm465, %v591, -inf
      %596 = vmax.xlane.f32.xlu0 %v595
      %v597 = vpop.xlane.xlu0 %596
      %v598 = vsub.f32 %v590, %v594
      %v599 = vsub.f32 %v591, %v597
      %v600 = vmul.f32 %v598, 1.442695
      %v601 = vpow.pop %v600
      %v602 = vmul.f32 %v599, 1.442695
      %v603 = vpow.pop %v602
      %v604 = vsel %vm465, %v601, 0.0
      %605 = vadd.xlane.f32.xlu0 %v604
      %v606 = vpop.xlane.xlu0 %605
      %v607 = vsel %vm465, %v603, 0.0
      %608 = vadd.xlane.f32.xlu0 %v607
      %v609 = vpop.xlane.xlu0 %608
      %v610 = vrcp.pop %v606
      %v611 = vrcp.pop %v609
      %v612 = vmul.f32 %v601, %v610
      %v613 = vmul.f32 %v603, %v611
      %v614 = vpack.c.bf16 %v613, %v612
      %615 = vrot.lane.b32.xlu0 %v403, 56
      %v616 = vpop.permute.xlu0 %615
      %v619 = vsel %vm465, %v614, 0
      %621 = vmatprep.subr.bf16.mxu0 0
      %622 = vmatpush1.bf16.msra.mxu0 %v616
      %623 = vmatprep.subr.bf16.mxu0 0
      %624 = vmatpush1.bf16.msra.mxu0 0
      %625 = vmatprep.subr.bf16.mxu0 0
      %626 = vmatpush1.bf16.msra.mxu0 0
      %627 = vmatprep.subr.bf16.mxu0 0
      %628 = vmatpush1.bf16.msra.mxu0 0
      %629 = vmatprep.subr.bf16.mxu0 0
      %630 = vmatpush1.bf16.msra.mxu0 0
      %631 = vmatprep.subr.bf16.mxu0 0
      %632 = vmatpush1.bf16.msra.mxu0 0
      %633 = vmatprep.subr.bf16.mxu0 0
      %634 = vmatpush1.bf16.msra.mxu0 0
      %635 = vmatprep.subr.bf16.mxu0 0
      %636 = vmatpush1.bf16.msra.mxu0 0
      %637 = vmatprep.subr.bf16.mxu0 0
      %638 = vmatpush1.bf16.msra.mxu0 0
      %639 = vmatprep.subr.bf16.mxu0 0
      %640 = vmatpush1.bf16.msra.mxu0 0
      %641 = vmatprep.subr.bf16.mxu0 0
      %642 = vmatpush1.bf16.msra.mxu0 0
      %643 = vmatprep.subr.bf16.mxu0 0
      %644 = vmatpush1.bf16.msra.mxu0 0
      %645 = vmatprep.subr.bf16.mxu0 0
      %646 = vmatpush1.bf16.msra.mxu0 0
      %647 = vmatprep.subr.bf16.mxu0 0
      %648 = vmatpush1.bf16.msra.mxu0 0
      %649 = vmatprep.subr.bf16.mxu0 0
      %650 = vmatpush1.bf16.msra.mxu0 0
      %651 = vmatprep.subr.bf16.mxu0 0
      %652 = vmatpush1.bf16.msra.mxu0 0
      %653 = vmatprep.mubr.bf16.mxu0 0
      %654 = vmatmul.mubr.bf16.gmra.mrb[0].mxu0 %v619
      %v655 = vpop.f32.mrb[0].mxu0
      %v656 = vadd.f32 0.0, %v655
      %v657 = vpop.f32.mrb[0].mxu0
      %v658 = vpop.f32.mrb[0].mxu0
      %v659 = vadd.f32 0.0, %v658
      %v660 = vpop.f32.mrb[0].mxu0
      %661 = vdwg.mxu0
      %v662 = vpack.c.bf16 %v659, %v656
      %v664 = vsel %vm407, %v662, 0
      %vm666 = vcmask 1043456
      %v668 = vsel %vm666, %v399, 0
      %670 = vmatprep.subr.bf16.mxu0 0
      %671 = vmatpush1.bf16.msra.mxu0 %v668
      %672 = vmatprep.subr.bf16.mxu0 0
      %673 = vmatpush1.bf16.msra.mxu0 0
      %674 = vmatprep.subr.bf16.mxu0 0
      %675 = vmatpush1.bf16.msra.mxu0 0
      %676 = vmatprep.subr.bf16.mxu0 0
      %677 = vmatpush1.bf16.msra.mxu0 0
      %678 = vmatprep.subr.bf16.mxu0 0
      %679 = vmatpush1.bf16.msra.mxu0 0
      %680 = vmatprep.subr.bf16.mxu0 0
      %681 = vmatpush1.bf16.msra.mxu0 0
      %682 = vmatprep.subr.bf16.mxu0 0
      %683 = vmatpush1.bf16.msra.mxu0 0
      %684 = vmatprep.subr.bf16.mxu0 0
      %685 = vmatpush1.bf16.msra.mxu0 0
      %686 = vmatprep.subr.bf16.mxu0 0
      %687 = vmatpush1.bf16.msra.mxu0 0
      %688 = vmatprep.subr.bf16.mxu0 0
      %689 = vmatpush1.bf16.msra.mxu0 0
      %690 = vmatprep.subr.bf16.mxu0 0
      %691 = vmatpush1.bf16.msra.mxu0 0
      %692 = vmatprep.subr.bf16.mxu0 0
      %693 = vmatpush1.bf16.msra.mxu0 0
      %694 = vmatprep.subr.bf16.mxu0 0
      %695 = vmatpush1.bf16.msra.mxu0 0
      %696 = vmatprep.subr.bf16.mxu0 0
      %697 = vmatpush1.bf16.msra.mxu0 0
      %698 = vmatprep.subr.bf16.mxu0 0
      %699 = vmatpush1.bf16.msra.mxu0 0
      %700 = vmatprep.subr.bf16.mxu0 0
      %701 = vmatpush1.bf16.msra.mxu0 0
      %702 = vmatprep.mubr.bf16.mxu0 0
      %703 = vmatmul.mubr.bf16.gmra.mrb[0].mxu0 %v664
      %v704 = vpop.f32.mrb[0].mxu0
      %v705 = vadd.f32 0.0, %v704
      %v706 = vpop.f32.mrb[0].mxu0
      %v707 = vpop.f32.mrb[0].mxu0
      %v708 = vadd.f32 0.0, %v707
      %v709 = vpop.f32.mrb[0].mxu0
      %710 = vdwg.mxu0
      %v712 = vsel %vm407, %v536, 0
      %v715 = vsel %vm666, %v398, 0
      %717 = vmatprep.subr.bf16.mxu0 0
      %718 = vmatpush1.bf16.msra.mxu0 %v715
      %719 = vmatprep.subr.bf16.mxu0 0
      %720 = vmatpush1.bf16.msra.mxu0 0
      %721 = vmatprep.subr.bf16.mxu0 0
      %722 = vmatpush1.bf16.msra.mxu0 0
      %723 = vmatprep.subr.bf16.mxu0 0
      %724 = vmatpush1.bf16.msra.mxu0 0
      %725 = vmatprep.subr.bf16.mxu0 0
      %726 = vmatpush1.bf16.msra.mxu0 0
      %727 = vmatprep.subr.bf16.mxu0 0
      %728 = vmatpush1.bf16.msra.mxu0 0
      %729 = vmatprep.subr.bf16.mxu0 0
      %730 = vmatpush1.bf16.msra.mxu0 0
      %731 = vmatprep.subr.bf16.mxu0 0
      %732 = vmatpush1.bf16.msra.mxu0 0
      %733 = vmatprep.subr.bf16.mxu0 0
      %734 = vmatpush1.bf16.msra.mxu0 0
      %735 = vmatprep.subr.bf16.mxu0 0
      %736 = vmatpush1.bf16.msra.mxu0 0
      %737 = vmatprep.subr.bf16.mxu0 0
      %738 = vmatpush1.bf16.msra.mxu0 0
      %739 = vmatprep.subr.bf16.mxu0 0
      %740 = vmatpush1.bf16.msra.mxu0 0
      %741 = vmatprep.subr.bf16.mxu0 0
      %742 = vmatpush1.bf16.msra.mxu0 0
      %743 = vmatprep.subr.bf16.mxu0 0
      %744 = vmatpush1.bf16.msra.mxu0 0
      %745 = vmatprep.subr.bf16.mxu0 0
      %746 = vmatpush1.bf16.msra.mxu0 0
      %747 = vmatprep.subr.bf16.mxu0 0
      %748 = vmatpush1.bf16.msra.mxu0 0
      %749 = vmatprep.mubr.bf16.mxu0 0
      %750 = vmatmul.mubr.bf16.gmra.mrb[0].mxu0 %v712
      %v751 = vpop.f32.mrb[0].mxu0
      %v752 = vadd.f32 %v705, %v751
      %v753 = vpop.f32.mrb[0].mxu0
      %v754 = vpop.f32.mrb[0].mxu0
      %v755 = vadd.f32 %v708, %v754
      %v756 = vpop.f32.mrb[0].mxu0
      %757 = vdwg.mxu0
      %758 = vrot.lane.b32.xlu0 %v403, 112
      %v759 = vpop.permute.xlu0 %758
      %760 = vrot.lane.b32.xlu0 %v403, 80
      %v761 = vpop.permute.xlu0 %760
      %v763 = vsel %vm407, %v759, 0
      %v766 = vsel %vm407, %v761, 0
      %768 = vmatprep.subr.bf16.mxu0 0
      %769 = vmatpush1.bf16.xpose.msra.mxu0 %v766
      %770 = vmatprep.subr.bf16.mxu0 0
      %771 = vmatpush1.bf16.xpose.msra.mxu0 0
      %772 = vmatprep.subr.bf16.mxu0 0
      %773 = vmatpush1.bf16.xpose.msra.mxu0 0
      %774 = vmatprep.subr.bf16.mxu0 0
      %775 = vmatpush1.bf16.xpose.msra.mxu0 0
      %776 = vmatprep.subr.bf16.mxu0 0
      %777 = vmatpush1.bf16.xpose.msra.mxu0 0
      %778 = vmatprep.subr.bf16.mxu0 0
      %779 = vmatpush1.bf16.xpose.msra.mxu0 0
      %780 = vmatprep.subr.bf16.mxu0 0
      %781 = vmatpush1.bf16.xpose.msra.mxu0 0
      %782 = vmatprep.subr.bf16.mxu0 0
      %783 = vmatpush1.bf16.xpose.msra.mxu0 0
      %784 = vmatprep.subr.bf16.mxu0 0
      %785 = vmatpush1.bf16.xpose.msra.mxu0 0
      %786 = vmatprep.subr.bf16.mxu0 0
      %787 = vmatpush1.bf16.xpose.msra.mxu0 0
      %788 = vmatprep.subr.bf16.mxu0 0
      %789 = vmatpush1.bf16.xpose.msra.mxu0 0
      %790 = vmatprep.subr.bf16.mxu0 0
      %791 = vmatpush1.bf16.xpose.msra.mxu0 0
      %792 = vmatprep.subr.bf16.mxu0 0
      %793 = vmatpush1.bf16.xpose.msra.mxu0 0
      %794 = vmatprep.subr.bf16.mxu0 0
      %795 = vmatpush1.bf16.xpose.msra.mxu0 0
      %796 = vmatprep.subr.bf16.mxu0 0
      %797 = vmatpush1.bf16.xpose.msra.mxu0 0
      %798 = vmatprep.subr.bf16.mxu0 0
      %799 = vmatpush1.bf16.xpose.msra.mxu0 0
      %800 = vmatprep.mubr.bf16.mxu0 0
      %801 = vmatmul.mubr.bf16.gmra.mrb[0].mxu0 %v763
      %v802 = vpop.f32.mrb[0].mxu0
      %v803 = vadd.f32 0.0, %v802
      %v804 = vpop.f32.mrb[0].mxu0
      %v805 = vpop.f32.mrb[0].mxu0
      %v806 = vadd.f32 0.0, %v805
      %v807 = vpop.f32.mrb[0].mxu0
      %808 = vdwg.mxu0
      %v809 = vmul.f32 %v803, 0.35355338
      %v810 = vmul.f32 %v806, 0.35355338
      %v811 = vadd.f32 %v809, %v461
      %v812 = vadd.f32 %v810, %v461
      %v813 = vsel %vm465, %v811, -inf
      %814 = vmax.xlane.f32.xlu0 %v813
      %v815 = vpop.xlane.xlu0 %814
      %v816 = vsel %vm465, %v812, -inf
      %817 = vmax.xlane.f32.xlu0 %v816
      %v818 = vpop.xlane.xlu0 %817
      %v819 = vsub.f32 %v811, %v815
      %v820 = vsub.f32 %v812, %v818
      %v821 = vmul.f32 %v819, 1.442695
      %v822 = vpow.pop %v821
      %v823 = vmul.f32 %v820, 1.442695
      %v824 = vpow.pop %v823
      %v825 = vsel %vm465, %v822, 0.0
      %826 = vadd.xlane.f32.xlu0 %v825
      %v827 = vpop.xlane.xlu0 %826
      %v828 = vsel %vm465, %v824, 0.0
      %829 = vadd.xlane.f32.xlu0 %v828
      %v830 = vpop.xlane.xlu0 %829
      %v831 = vrcp.pop %v827
      %v832 = vrcp.pop %v830
      %v833 = vmul.f32 %v822, %v831
      %v834 = vmul.f32 %v824, %v832
      %v835 = vpack.c.bf16 %v834, %v833
      %836 = vrot.lane.b32.xlu0 %v403, 48
      %v837 = vpop.permute.xlu0 %836
      %v840 = vsel %vm465, %v835, 0
      %842 = vmatprep.subr.bf16.mxu0 0
      %843 = vmatpush1.bf16.msra.mxu0 %v837
      %844 = vmatprep.subr.bf16.mxu0 0
      %845 = vmatpush1.bf16.msra.mxu0 0
      %846 = vmatprep.subr.bf16.mxu0 0
      %847 = vmatpush1.bf16.msra.mxu0 0
      %848 = vmatprep.subr.bf16.mxu0 0
      %849 = vmatpush1.bf16.msra.mxu0 0
      %850 = vmatprep.subr.bf16.mxu0 0
      %851 = vmatpush1.bf16.msra.mxu0 0
      %852 = vmatprep.subr.bf16.mxu0 0
      %853 = vmatpush1.bf16.msra.mxu0 0
      %854 = vmatprep.subr.bf16.mxu0 0
      %855 = vmatpush1.bf16.msra.mxu0 0
      %856 = vmatprep.subr.bf16.mxu0 0
      %857 = vmatpush1.bf16.msra.mxu0 0
      %858 = vmatprep.subr.bf16.mxu0 0
      %859 = vmatpush1.bf16.msra.mxu0 0
      %860 = vmatprep.subr.bf16.mxu0 0
      %861 = vmatpush1.bf16.msra.mxu0 0
      %862 = vmatprep.subr.bf16.mxu0 0
      %863 = vmatpush1.bf16.msra.mxu0 0
      %864 = vmatprep.subr.bf16.mxu0 0
      %865 = vmatpush1.bf16.msra.mxu0 0
      %866 = vmatprep.subr.bf16.mxu0 0
      %867 = vmatpush1.bf16.msra.mxu0 0
      %868 = vmatprep.subr.bf16.mxu0 0
      %869 = vmatpush1.bf16.msra.mxu0 0
      %870 = vmatprep.subr.bf16.mxu0 0
      %871 = vmatpush1.bf16.msra.mxu0 0
      %872 = vmatprep.subr.bf16.mxu0 0
      %873 = vmatpush1.bf16.msra.mxu0 0
      %874 = vmatprep.mubr.bf16.mxu0 0
      %875 = vmatmul.mubr.bf16.gmra.mrb[0].mxu0 %v840
      %v876 = vpop.f32.mrb[0].mxu0
      %v877 = vadd.f32 0.0, %v876
      %v878 = vpop.f32.mrb[0].mxu0
      %v879 = vpop.f32.mrb[0].mxu0
      %v880 = vadd.f32 0.0, %v879
      %v881 = vpop.f32.mrb[0].mxu0
      %882 = vdwg.mxu0
      %v883 = vpack.c.bf16 %v880, %v877
      %v885 = vsel %vm407, %v883, 0
      %v888 = vsel %vm666, %v400, 0
      %890 = vmatprep.subr.bf16.mxu0 0
      %891 = vmatpush1.bf16.msra.mxu0 %v888
      %892 = vmatprep.subr.bf16.mxu0 0
      %893 = vmatpush1.bf16.msra.mxu0 0
      %894 = vmatprep.subr.bf16.mxu0 0
      %895 = vmatpush1.bf16.msra.mxu0 0
      %896 = vmatprep.subr.bf16.mxu0 0
      %897 = vmatpush1.bf16.msra.mxu0 0
      %898 = vmatprep.subr.bf16.mxu0 0
      %899 = vmatpush1.bf16.msra.mxu0 0
      %900 = vmatprep.subr.bf16.mxu0 0
      %901 = vmatpush1.bf16.msra.mxu0 0
      %902 = vmatprep.subr.bf16.mxu0 0
      %903 = vmatpush1.bf16.msra.mxu0 0
      %904 = vmatprep.subr.bf16.mxu0 0
      %905 = vmatpush1.bf16.msra.mxu0 0
      %906 = vmatprep.subr.bf16.mxu0 0
      %907 = vmatpush1.bf16.msra.mxu0 0
      %908 = vmatprep.subr.bf16.mxu0 0
      %909 = vmatpush1.bf16.msra.mxu0 0
      %910 = vmatprep.subr.bf16.mxu0 0
      %911 = vmatpush1.bf16.msra.mxu0 0
      %912 = vmatprep.subr.bf16.mxu0 0
      %913 = vmatpush1.bf16.msra.mxu0 0
      %914 = vmatprep.subr.bf16.mxu0 0
      %915 = vmatpush1.bf16.msra.mxu0 0
      %916 = vmatprep.subr.bf16.mxu0 0
      %917 = vmatpush1.bf16.msra.mxu0 0
      %918 = vmatprep.subr.bf16.mxu0 0
      %919 = vmatpush1.bf16.msra.mxu0 0
      %920 = vmatprep.subr.bf16.mxu0 0
      %921 = vmatpush1.bf16.msra.mxu0 0
      %922 = vmatprep.mubr.bf16.mxu0 0
      %923 = vmatmul.mubr.bf16.gmra.mrb[0].mxu0 %v885
      %v924 = vpop.f32.mrb[0].mxu0
      %v925 = vadd.f32 0.0, %v924
      %v926 = vpop.f32.mrb[0].mxu0
      %v927 = vpop.f32.mrb[0].mxu0
      %v928 = vadd.f32 0.0, %v927
      %v929 = vpop.f32.mrb[0].mxu0
      %930 = vdwg.mxu0
      %v931 = vadd.f32 %v752, %v925
      %v932 = vadd.f32 %v755, %v928
      %933 = vrot.lane.b32.xlu0 %v403, 104
      %v934 = vpop.permute.xlu0 %933
      %935 = vrot.lane.b32.xlu0 %v403, 72
      %v936 = vpop.permute.xlu0 %935
      %v938 = vsel %vm407, %v934, 0
      %v941 = vsel %vm407, %v936, 0
      %943 = vmatprep.subr.bf16.mxu0 0
      %944 = vmatpush1.bf16.xpose.msra.mxu0 %v941
      %945 = vmatprep.subr.bf16.mxu0 0
      %946 = vmatpush1.bf16.xpose.msra.mxu0 0
      %947 = vmatprep.subr.bf16.mxu0 0
      %948 = vmatpush1.bf16.xpose.msra.mxu0 0
      %949 = vmatprep.subr.bf16.mxu0 0
      %950 = vmatpush1.bf16.xpose.msra.mxu0 0
      %951 = vmatprep.subr.bf16.mxu0 0
      %952 = vmatpush1.bf16.xpose.msra.mxu0 0
      %953 = vmatprep.subr.bf16.mxu0 0
      %954 = vmatpush1.bf16.xpose.msra.mxu0 0
      %955 = vmatprep.subr.bf16.mxu0 0
      %956 = vmatpush1.bf16.xpose.msra.mxu0 0
      %957 = vmatprep.subr.bf16.mxu0 0
      %958 = vmatpush1.bf16.xpose.msra.mxu0 0
      %959 = vmatprep.subr.bf16.mxu0 0
      %960 = vmatpush1.bf16.xpose.msra.mxu0 0
      %961 = vmatprep.subr.bf16.mxu0 0
      %962 = vmatpush1.bf16.xpose.msra.mxu0 0
      %963 = vmatprep.subr.bf16.mxu0 0
      %964 = vmatpush1.bf16.xpose.msra.mxu0 0
      %965 = vmatprep.subr.bf16.mxu0 0
      %966 = vmatpush1.bf16.xpose.msra.mxu0 0
      %967 = vmatprep.subr.bf16.mxu0 0
      %968 = vmatpush1.bf16.xpose.msra.mxu0 0
      %969 = vmatprep.subr.bf16.mxu0 0
      %970 = vmatpush1.bf16.xpose.msra.mxu0 0
      %971 = vmatprep.subr.bf16.mxu0 0
      %972 = vmatpush1.bf16.xpose.msra.mxu0 0
      %973 = vmatprep.subr.bf16.mxu0 0
      %974 = vmatpush1.bf16.xpose.msra.mxu0 0
      %975 = vmatprep.mubr.bf16.mxu0 0
      %976 = vmatmul.mubr.bf16.gmra.mrb[0].mxu0 %v938
      %v977 = vpop.f32.mrb[0].mxu0
      %v978 = vadd.f32 0.0, %v977
      %v979 = vpop.f32.mrb[0].mxu0
      %v980 = vpop.f32.mrb[0].mxu0
      %v981 = vadd.f32 0.0, %v980
      %v982 = vpop.f32.mrb[0].mxu0
      %983 = vdwg.mxu0
      %v984 = vmul.f32 %v978, 0.35355338
      %v985 = vmul.f32 %v981, 0.35355338
      %v986 = vadd.f32 %v984, %v461
      %v987 = vadd.f32 %v985, %v461
      %v988 = vsel %vm465, %v986, -inf
      %989 = vmax.xlane.f32.xlu0 %v988
      %v990 = vpop.xlane.xlu0 %989
      %v991 = vsel %vm465, %v987, -inf
      %992 = vmax.xlane.f32.xlu0 %v991
      %v993 = vpop.xlane.xlu0 %992
      %v994 = vsub.f32 %v986, %v990
      %v995 = vsub.f32 %v987, %v993
      %v996 = vmul.f32 %v994, 1.442695
      %v997 = vpow.pop %v996
      %v998 = vmul.f32 %v995, 1.442695
      %v999 = vpow.pop %v998
      %v1000 = vsel %vm465, %v997, 0.0
      %1001 = vadd.xlane.f32.xlu0 %v1000
      %v1002 = vpop.xlane.xlu0 %1001
      %v1003 = vsel %vm465, %v999, 0.0
      %1004 = vadd.xlane.f32.xlu0 %v1003
      %v1005 = vpop.xlane.xlu0 %1004
      %v1006 = vrcp.pop %v1002
      %v1007 = vrcp.pop %v1005
      %v1008 = vmul.f32 %v997, %v1006
      %v1009 = vmul.f32 %v999, %v1007
      %v1010 = vpack.c.bf16 %v1009, %v1008
      %1011 = vrot.lane.b32.xlu0 %v403, 40
      %v1012 = vpop.permute.xlu0 %1011
      %v1015 = vsel %vm465, %v1010, 0
      %1017 = vmatprep.subr.bf16.mxu0 0
      %1018 = vmatpush1.bf16.msra.mxu0 %v1012
      %1019 = vmatprep.subr.bf16.mxu0 0
      %1020 = vmatpush1.bf16.msra.mxu0 0
      %1021 = vmatprep.subr.bf16.mxu0 0
      %1022 = vmatpush1.bf16.msra.mxu0 0
      %1023 = vmatprep.subr.bf16.mxu0 0
      %1024 = vmatpush1.bf16.msra.mxu0 0
      %1025 = vmatprep.subr.bf16.mxu0 0
      %1026 = vmatpush1.bf16.msra.mxu0 0
      %1027 = vmatprep.subr.bf16.mxu0 0
      %1028 = vmatpush1.bf16.msra.mxu0 0
      %1029 = vmatprep.subr.bf16.mxu0 0
      %1030 = vmatpush1.bf16.msra.mxu0 0
      %1031 = vmatprep.subr.bf16.mxu0 0
      %1032 = vmatpush1.bf16.msra.mxu0 0
      %1033 = vmatprep.subr.bf16.mxu0 0
      %1034 = vmatpush1.bf16.msra.mxu0 0
      %1035 = vmatprep.subr.bf16.mxu0 0
      %1036 = vmatpush1.bf16.msra.mxu0 0
      %1037 = vmatprep.subr.bf16.mxu0 0
      %1038 = vmatpush1.bf16.msra.mxu0 0
      %1039 = vmatprep.subr.bf16.mxu0 0
      %1040 = vmatpush1.bf16.msra.mxu0 0
      %1041 = vmatprep.subr.bf16.mxu0 0
      %1042 = vmatpush1.bf16.msra.mxu0 0
      %1043 = vmatprep.subr.bf16.mxu0 0
      %1044 = vmatpush1.bf16.msra.mxu0 0
      %1045 = vmatprep.subr.bf16.mxu0 0
      %1046 = vmatpush1.bf16.msra.mxu0 0
      %1047 = vmatprep.subr.bf16.mxu0 0
      %1048 = vmatpush1.bf16.msra.mxu0 0
      %1049 = vmatprep.mubr.bf16.mxu0 0
      %1050 = vmatmul.mubr.bf16.gmra.mrb[0].mxu0 %v1015
      %v1051 = vpop.f32.mrb[0].mxu0
      %v1052 = vadd.f32 0.0, %v1051
      %v1053 = vpop.f32.mrb[0].mxu0
      %v1054 = vpop.f32.mrb[0].mxu0
      %v1055 = vadd.f32 0.0, %v1054
      %v1056 = vpop.f32.mrb[0].mxu0
      %1057 = vdwg.mxu0
      %v1058 = vpack.c.bf16 %v1055, %v1052
      %v1060 = vsel %vm407, %v1058, 0
      %v1063 = vsel %vm666, %v401, 0
      %1065 = vmatprep.subr.bf16.mxu0 0
      %1066 = vmatpush1.bf16.msra.mxu0 %v1063
      %1067 = vmatprep.subr.bf16.mxu0 0
      %1068 = vmatpush1.bf16.msra.mxu0 0
      %1069 = vmatprep.subr.bf16.mxu0 0
      %1070 = vmatpush1.bf16.msra.mxu0 0
      %1071 = vmatprep.subr.bf16.mxu0 0
      %1072 = vmatpush1.bf16.msra.mxu0 0
      %1073 = vmatprep.subr.bf16.mxu0 0
      %1074 = vmatpush1.bf16.msra.mxu0 0
      %1075 = vmatprep.subr.bf16.mxu0 0
      %1076 = vmatpush1.bf16.msra.mxu0 0
      %1077 = vmatprep.subr.bf16.mxu0 0
      %1078 = vmatpush1.bf16.msra.mxu0 0
      %1079 = vmatprep.subr.bf16.mxu0 0
      %1080 = vmatpush1.bf16.msra.mxu0 0
      %1081 = vmatprep.subr.bf16.mxu0 0
      %1082 = vmatpush1.bf16.msra.mxu0 0
      %1083 = vmatprep.subr.bf16.mxu0 0
      %1084 = vmatpush1.bf16.msra.mxu0 0
      %1085 = vmatprep.subr.bf16.mxu0 0
      %1086 = vmatpush1.bf16.msra.mxu0 0
      %1087 = vmatprep.subr.bf16.mxu0 0
      %1088 = vmatpush1.bf16.msra.mxu0 0
      %1089 = vmatprep.subr.bf16.mxu0 0
      %1090 = vmatpush1.bf16.msra.mxu0 0
      %1091 = vmatprep.subr.bf16.mxu0 0
      %1092 = vmatpush1.bf16.msra.mxu0 0
      %1093 = vmatprep.subr.bf16.mxu0 0
      %1094 = vmatpush1.bf16.msra.mxu0 0
      %1095 = vmatprep.subr.bf16.mxu0 0
      %1096 = vmatpush1.bf16.msra.mxu0 0
      %1097 = vmatprep.mubr.bf16.mxu0 0
      %1098 = vmatmul.mubr.bf16.gmra.mrb[0].mxu0 %v1060
      %v1099 = vpop.f32.mrb[0].mxu0
      %v1100 = vadd.f32 0.0, %v1099
      %v1101 = vpop.f32.mrb[0].mxu0
      %v1102 = vpop.f32.mrb[0].mxu0
      %v1103 = vadd.f32 0.0, %v1102
      %v1104 = vpop.f32.mrb[0].mxu0
      %1105 = vdwg.mxu0
      %v1106 = vadd.f32 %v931, %v1100
      %v1107 = vadd.f32 %v932, %v1103
      %v1108 = vld [vmem:[%s4] sm:$0x1]
      %v1110 = vlaneseq
      %v1111 = vshrl.u32 %v1110, 7
      %v1112 = vsub.s32 0, %v1111
      %v1113 = vrot.slane %v1108, %v1112
      %v1115 = vadd.f32 %v1106, %v1113
      %v1116 = vadd.f32 %v1107, %v1113
      %v1117 = vadd.f32 %v1115, %v323
      %v1118 = vadd.f32 %v1116, %v324
      %v1119 = vld [vmem:[%s5] sm:$0x1]
      %v1120 = vld [vmem:[%s6] sm:$0x1]
      %v1121 = vsel %vm353, %v1117, 0.0
      %1122 = vadd.xlane.f32.xlu0 %v1121
      %v1123 = vpop.xlane.xlu0 %1122
      %v1124 = vsel %vm353, %v1118, 0.0
      %1125 = vadd.xlane.f32.xlu0 %v1124
      %v1126 = vpop.xlane.xlu0 %1125
      %v1127 = vrcp.pop 32.0
      %v1128 = vmul.f32 %v1123, %v1127
      %v1129 = vmul.f32 %v1126, %v1127
      %v1130 = vsub.f32 %v1117, %v1128
      %v1131 = vsub.f32 %v1118, %v1129
      %v1132 = vmul.f32 %v1130, %v1130
      %v1133 = vmul.f32 %v1131, %v1131
      %v1134 = vsel %vm353, %v1132, 0.0
      %1135 = vadd.xlane.f32.xlu0 %v1134
      %v1136 = vpop.xlane.xlu0 %1135
      %v1137 = vsel %vm353, %v1133, 0.0
      %1138 = vadd.xlane.f32.xlu0 %v1137
      %v1139 = vpop.xlane.xlu0 %1138
      %v1140 = vmul.f32 %v1136, %v1127
      %v1141 = vmul.f32 %v1139, %v1127
      %v1142 = vadd.f32 %v1140, 1e-12
      %v1143 = vadd.f32 %v1141, 1e-12
      %v1144 = vrsqrt.pop %v1142
      %v1145 = vrsqrt.pop %v1143
      %v1146 = vmul.f32 %v1130, %v1144
      %v1147 = vmul.f32 %v1131, %v1145
      %v1149 = vlaneseq
      %v1150 = vshrl.u32 %v1149, 7
      %v1151 = vsub.s32 0, %v1150
      %v1152 = vrot.slane %v1119, %v1151
      %v1154 = vmul.f32 %v1146, %v1152
      %v1155 = vmul.f32 %v1147, %v1152
      %v1157 = vlaneseq
      %v1158 = vshrl.u32 %v1157, 7
      %v1159 = vsub.s32 0, %v1158
      %v1160 = vrot.slane %v1120, %v1159
      %v1162 = vadd.f32 %v1154, %v1160
      %v1163 = vadd.f32 %v1155, %v1160
      %v1164 = vpack.c.bf16 %v1163, %v1162
      %v1166 = vunpack.c.l.b16 %v1164
      %v1167 = vunpack.c.h.b16 %v1164
      %v1168 = vpack.c.b16 %v1166, %v1166
      %v1169 = vpack.c.b16 %v1167, %v1167
      %vm1172 = vcmask 257024
      %1173 = vst.msk [vmem:[%s319] sm:$0xf] %vm1172, %v1168
      %1174 = vst.msk [vmem:[%s319 + $0x4] sm:$0xf] %vm1172, %v1169
      %p1175 = scmp.lt.s32.totalorder %s19, 1
      %s1176 = scalar_select %p1175, %s19, 1
      %s1177 = smul.addr %s1176, 2
      %s1178 = smul.addr %s1177, 4
      %s1179 = scalar_lea.vmem %s8, %s1178
      // Predicated region
      $region53: #{_lambda_.7} parent=51 // pred_check
        %p1180 = pneg %p215
      $region54: #{_lambda_.7} parent=51 // pred_check_branch
        %1182 = sbr.rel (%p1180) target = $region56
      $region55: #{_lambda_.7} parent=51 // pred_region
        _
      $region56: #{_lambda_.7} parent=51 // pred_fallthru
        _
    $region52: #{_lambda_.7} parent=5 // pred_fallthru
      _
    %p1183 = scmp.le.s32.totalorder 2, %s14
    // Predicated region
    $region57: #{_lambda_.7} parent=5 // pred_check
      %p1184 = pneg %p1183
    $region58: #{_lambda_.7} parent=5 // pred_check_branch
      %1186 = sbr.rel (%p1184) target = $region60
    $region59: #{_lambda_.7} parent=5 // pred_region
      %s1187 = ssub.s32 %s14, 2
      // Predicated region
      $region61: #{_lambda_.7} parent=59 // pred_check
        %p1188 = pneg %p221
      $region62: #{_lambda_.7} parent=59 // pred_check_branch
        %1190 = sbr.rel (%p1188) target = $region64
      $region63: #{_lambda_.7} parent=59 // pred_region
        %p1191 = scmp.lt.s32.totalorder %s20, 1
        %s1192 = scalar_select %p1191, %s20, 1
        %s1193 = smul.addr %s1192, 2
        %s1194 = smul.addr %s1193, 4
        %s1195 = scalar_lea.vmem %s8, %s1194
      $region64: #{_lambda_.7} parent=59 // pred_fallthru
        _
    $region60: #{_lambda_.7} parent=5 // pred_fallthru
      _
  $region6: #{_lambda_.7} parent=0 // loop_footer
    %s18 = sadd.s32 1, %s14
  $region7: #{_lambda_.7} parent=0 // loop_footer_branch
    %13 = sbr.rel target = $region3
  $region8: #{_lambda_.7} parent=0 // loop_exit
    _

</llo_original>
